<compile_context>
chip_gen: v6e
topology: v6e:2x2x1
jax: 0.10.0
libtpu: 0.0.40
codegen_flags: <defaults>
</compile_context>

<pallas_src>
import functools

import jax
import jax.numpy as jnp
import numpy as np
from jax.experimental import pallas as pl
from jax.experimental.pallas import tpu as pltpu  # noqa: F401  (TPU backend)


def ego_state_gru_kernel(x_flat_ref, w_ih_all_ref, w_hh_all_ref, b_i_ref,
                         b_h_ref, fc_w_t_ref, fc_b_ref, comb_w_ref, comb_b_ref,
                         fp2_ref, *, batch, seq_len, future_steps, hidden_dim):
    B = batch
    H = hidden_dim

    w_ih_all = w_ih_all_ref[...]   # [Din, 3H]  columns ordered [r | z | n]
    w_hh_all = w_hh_all_ref[...]   # [H,   3H]
    b_i = b_i_ref[...]             # [1, 3H]  (b_ir+b_hr | b_iz+b_hz | b_in)
    b_h = b_h_ref[...]             # [1, 3H]  (0 | 0 | b_hn)
    fc_w_t = fc_w_t_ref[...]       # [H, O]
    fc_b = fc_b_ref[...]           # [1, O]
    comb_w = comb_w_ref[...]       # [H, Din] = fc_w^T @ fut_w^T
    comb_b = comb_b_ref[...]       # [1, Din] = fc_b @ fut_w^T + fut_b

    def gru_step(gi, h):
        # gi already contains the input-side projection (+ fused biases).
        # PyTorch nn.GRU cell, gate order r, z, n:
        #   r = sigmoid(gi_r + gh_r); z = sigmoid(gi_z + gh_z)
        #   n = tanh(gi_n + r * gh_n); h' = (1 - z) * n + z * h
        gh = jnp.dot(h, w_hh_all, preferred_element_type=jnp.float32) + b_h
        r = jax.nn.sigmoid(gi[:, :H] + gh[:, :H])
        z = jax.nn.sigmoid(gi[:, H:2 * H] + gh[:, H:2 * H])
        n = jnp.tanh(gi[:, 2 * H:] + r * gh[:, 2 * H:])
        return (1.0 - z) * n + z * h

    # Input-side gate projections for the whole observed sequence in ONE MXU
    # call, off the serial recurrence.  x_flat is time-major [S*B, Din], so
    # time step t occupies the contiguous row block [t*B, (t+1)*B).
    gi_all = (jnp.dot(x_flat_ref[...], w_ih_all,
                      preferred_element_type=jnp.float32) + b_i)   # [S*B, 3H]

    # --- encode the observed sequence (h0 = 0, nn.GRU default) ---
    h = jnp.zeros((B, H), jnp.float32)
    for t in range(seq_len):
        h = gru_step(gi_all[t * B:(t + 1) * B, :], h)

    # TODO(synk): nn.Dropout is treated as identity (eval / inference mode).
    # fc -> future_fc collapsed into a single matmul on the recurrence path.
    fut_in = jnp.dot(h, comb_w, preferred_element_type=jnp.float32) + comb_b

    # --- autoregressive future rollout ---
    for step in range(future_steps):
        gi = jnp.dot(fut_in, w_ih_all, preferred_element_type=jnp.float32) + b_i
        h = gru_step(gi, h)
        # Output projection is off the h->h critical path.
        next_output = jnp.dot(h, fc_w_t, preferred_element_type=jnp.float32) + fc_b
        fp2_ref[:, step + 1, :] = next_output
        if step + 1 < future_steps:
            fut_in = jnp.dot(h, comb_w, preferred_element_type=jnp.float32) + comb_b

    # future_pred_2[:, 0, :] = final hidden_state.transpose(0, 1) (num_layers=1)
    fp2_ref[:, 0, :] = h


def prepare_params(params):
    """One-time parameter prep (hoist out of the per-call path): fuse the gate
    weights on the lane axis, pre-sum r/z biases, collapse fc -> future_fc."""
    H = params["w_hh"].shape[-1]
    Din = params["w_ih"].shape[-1]
    O = params["fc_w"].shape[0]

    w_ih_all = params["w_ih"].T          # [Din, 3H], columns [r | z | n]
    w_hh_all = params["w_hh"].T          # [H,   3H]

    b_ih = params["b_ih"].reshape(3, H)
    b_hh = params["b_hh"].reshape(3, H)
    # r/z biases can be pre-summed; b_in stays with the input projection and
    # b_hn stays with the hidden projection (it is multiplied by r).
    b_i = jnp.concatenate(
        [b_ih[0] + b_hh[0], b_ih[1] + b_hh[1], b_ih[2]]).reshape(1, 3 * H)
    b_h = jnp.concatenate(
        [jnp.zeros((2 * H,), jnp.float32), b_hh[2]]).reshape(1, 3 * H)

    fc_w_t = params["fc_w"].T            # [H, O]
    fc_b = params["fc_b"].reshape(1, O)
    fut_w_t = params["fut_w"].T          # [O, Din]
    fut_b = params["fut_b"].reshape(1, Din)
    comb_w = fc_w_t @ fut_w_t            # [H, Din]
    comb_b = fc_b @ fut_w_t + fut_b      # [1, Din]

    return dict(w_ih_all=w_ih_all, w_hh_all=w_hh_all, b_i=b_i, b_h=b_h,
                fc_w_t=fc_w_t, fc_b=fc_b, comb_w=comb_w, comb_b=comb_b)


def ego_state_gru(x, prepped, future_steps=2):
    B, S, Din = x.shape
    H = prepped["w_hh_all"].shape[0]
    O = prepped["fc_w_t"].shape[1]
    # torch.cat((hidden_state, future_pred), dim=1) requires hidden == output dim.
    assert H == O

    # Time-major flatten so time step t is a contiguous row block in the kernel
    # (avoids any in-kernel relayout; x is tiny so this XLA op is negligible).
    x_flat = jnp.transpose(x, (1, 0, 2)).reshape(S * B, Din)

    kernel = functools.partial(
        ego_state_gru_kernel,
        batch=B, seq_len=S, future_steps=future_steps, hidden_dim=H)

    fp2 = pl.pallas_call(
        kernel,
        out_shape=jax.ShapeDtypeStruct((B, future_steps + 1, H), jnp.float32),
    )(x_flat, prepped["w_ih_all"], prepped["w_hh_all"], prepped["b_i"],
      prepped["b_h"], prepped["fc_w_t"], prepped["fc_b"],
      prepped["comb_w"], prepped["comb_b"])

    # future_pred is exactly the tail of future_pred_2: single output stream
    # from the kernel, sliced host-side (halves output writeback).
    fp = fp2[:, 1:, :]
    return fp, fp2


def ref_forward(x, params, future_steps=2):
    """Pure-JAX reference replicating the PyTorch forward (eval mode)."""
    H = params["w_hh"].shape[-1]
    w_ih, w_hh = params["w_ih"], params["w_hh"]
    b_ih, b_hh = params["b_ih"], params["b_hh"]

    def cell(xt, h):
        gi = xt @ w_ih.T + b_ih
        gh = h @ w_hh.T + b_hh
        i_r, i_z, i_n = jnp.split(gi, 3, axis=-1)
        h_r, h_z, h_n = jnp.split(gh, 3, axis=-1)
        r = jax.nn.sigmoid(i_r + h_r)
        z = jax.nn.sigmoid(i_z + h_z)
        n = jnp.tanh(i_n + r * h_n)
        return (1.0 - z) * n + z * h

    B, S, _ = x.shape
    h = jnp.zeros((B, H), x.dtype)
    for t in range(S):
        h = cell(x[:, t, :], h)

    fc = lambda v: v @ params["fc_w"].T + params["fc_b"]
    ffc = lambda v: v @ params["fut_w"].T + params["fut_b"]

    fut_in = ffc(fc(h))
    preds = []
    for _ in range(future_steps):
        h = cell(fut_in, h)
        out = fc(h)
        preds.append(out[:, None, :])
        fut_in = ffc(out)
    fp = jnp.concatenate(preds, axis=1)
    fp2 = jnp.concatenate([h[:, None, :], fp], axis=1)
    return fp, fp2


if __name__ == "__main__":
    # Small shapes consistent with the module's forward:
    #   x: [batch=2, seq_len=3, input_dim=16]; hidden_dim = output_dim = 32.
    B, S, Din, H = 2, 3, 16, 32
    O = H
    future_steps = 2

    key = jax.random.PRNGKey(0)
    ks = jax.random.split(key, 10)
    s = 1.0 / float(np.sqrt(H))
    params = {
        "w_ih": jax.random.uniform(ks[0], (3 * H, Din), jnp.float32, -s, s),
        "w_hh": jax.random.uniform(ks[1], (3 * H, H), jnp.float32, -s, s),
        "b_ih": jax.random.uniform(ks[2], (3 * H,), jnp.float32, -s, s),
        "b_hh": jax.random.uniform(ks[3], (3 * H,), jnp.float32, -s, s),
        "fc_w": jax.random.uniform(ks[4], (O, H), jnp.float32, -s, s),
        "fc_b": jax.random.uniform(ks[5], (O,), jnp.float32, -s, s),
        "fut_w": jax.random.uniform(ks[6], (Din, O), jnp.float32, -s, s),
        "fut_b": jax.random.uniform(ks[7], (Din,), jnp.float32, -s, s),
    }
    x = jax.random.normal(ks[8], (B, S, Din), jnp.float32)

    # One-time parameter prep (fused / transposed weights), reused across calls.
    prepped = jax.block_until_ready(prepare_params(params))

    fp, fp2 = jax.block_until_ready(ego_state_gru(x, prepped, future_steps))
    fp_ref, fp2_ref = ref_forward(x, params, future_steps)

    assert fp.shape == (B, future_steps, O)
    assert fp2.shape == (B, future_steps + 1, H)
    np.testing.assert_allclose(np.asarray(fp), np.asarray(fp_ref),
                               rtol=1e-5, atol=1e-5)
    np.testing.assert_allclose(np.asarray(fp2), np.asarray(fp2_ref),
                               rtol=1e-5, atol=1e-5)
    print("KERNEL_OK")
</pallas_src>

<mosaic_0001>
module attributes {stable_mosaic.version = 11 : i64} {
  func.func @ego_state_gru_kernel(%arg0: memref<6x16xf32, #tpu.memory_space<vmem>>, %arg1: memref<16x96xf32, #tpu.memory_space<vmem>>, %arg2: memref<32x96xf32, #tpu.memory_space<vmem>>, %arg3: memref<1x96xf32, #tpu.memory_space<vmem>>, %arg4: memref<1x96xf32, #tpu.memory_space<vmem>>, %arg5: memref<32x32xf32, #tpu.memory_space<vmem>>, %arg6: memref<1x32xf32, #tpu.memory_space<vmem>>, %arg7: memref<32x16xf32, #tpu.memory_space<vmem>>, %arg8: memref<1x16xf32, #tpu.memory_space<vmem>>, %arg9: memref<2x3x32xf32, #tpu.memory_space<vmem>>) attributes {dimension_semantics = [], scalar_prefetch = 0 : i64, scratch_operands = 0 : i64, tpu.core_type = #tpu.core_type<tc>} {
    %c0 = arith.constant 0 : index
    %c0_0 = arith.constant 0 : index
    %0 = vector.load %arg1[%c0, %c0_0] : memref<16x96xf32, #tpu.memory_space<vmem>>, vector<16x96xf32>
    %c0_1 = arith.constant 0 : index
    %c0_2 = arith.constant 0 : index
    %1 = vector.load %arg2[%c0_1, %c0_2] : memref<32x96xf32, #tpu.memory_space<vmem>>, vector<32x96xf32>
    %c0_3 = arith.constant 0 : index
    %c0_4 = arith.constant 0 : index
    %2 = vector.load %arg3[%c0_3, %c0_4] : memref<1x96xf32, #tpu.memory_space<vmem>>, vector<1x96xf32>
    %c0_5 = arith.constant 0 : index
    %c0_6 = arith.constant 0 : index
    %3 = vector.load %arg4[%c0_5, %c0_6] : memref<1x96xf32, #tpu.memory_space<vmem>>, vector<1x96xf32>
    %c0_7 = arith.constant 0 : index
    %c0_8 = arith.constant 0 : index
    %4 = vector.load %arg5[%c0_7, %c0_8] : memref<32x32xf32, #tpu.memory_space<vmem>>, vector<32x32xf32>
    %c0_9 = arith.constant 0 : index
    %c0_10 = arith.constant 0 : index
    %5 = vector.load %arg6[%c0_9, %c0_10] : memref<1x32xf32, #tpu.memory_space<vmem>>, vector<1x32xf32>
    %c0_11 = arith.constant 0 : index
    %c0_12 = arith.constant 0 : index
    %6 = vector.load %arg7[%c0_11, %c0_12] : memref<32x16xf32, #tpu.memory_space<vmem>>, vector<32x16xf32>
    %c0_13 = arith.constant 0 : index
    %c0_14 = arith.constant 0 : index
    %7 = vector.load %arg8[%c0_13, %c0_14] : memref<1x16xf32, #tpu.memory_space<vmem>>, vector<1x16xf32>
    %c0_15 = arith.constant 0 : index
    %c0_16 = arith.constant 0 : index
    %8 = vector.load %arg0[%c0_15, %c0_16] : memref<6x16xf32, #tpu.memory_space<vmem>>, vector<6x16xf32>
    %cst = arith.constant dense<0.000000e+00> : vector<6x96xf32>
    %9 = tpu.matmul %8, %0, %cst {dimension_numbers = #tpu.dot_dimension_numbers<[1], [0], [0], [1], [0, 0, 1, 1], [], []>} : vector<6x16xf32>, vector<16x96xf32>, vector<6x96xf32> -> vector<6x96xf32>
    %10 = vector.broadcast %2 : vector<1x96xf32> to vector<6x96xf32>
    %11 = arith.addf %9, %10 : vector<6x96xf32>
    %cst_17 = arith.constant 0.000000e+00 : f32
    %12 = vector.broadcast %cst_17 : f32 to vector<2x32xf32>
    %13 = vector.extract_strided_slice %11 {offsets = [0, 0], sizes = [2, 96], strides = [1, 1]} : vector<6x96xf32> to vector<2x96xf32>
    %cst_18 = arith.constant dense<0.000000e+00> : vector<2x96xf32>
    %14 = tpu.matmul %12, %1, %cst_18 {dimension_numbers = #tpu.dot_dimension_numbers<[1], [0], [0], [1], [0, 0, 1, 1], [], []>} : vector<2x32xf32>, vector<32x96xf32>, vector<2x96xf32> -> vector<2x96xf32>
    %15 = vector.broadcast %3 : vector<1x96xf32> to vector<2x96xf32>
    %16 = arith.addf %14, %15 : vector<2x96xf32>
    %17 = vector.extract_strided_slice %13 {offsets = [0, 0], sizes = [2, 32], strides = [1, 1]} : vector<2x96xf32> to vector<2x32xf32>
    %18 = vector.extract_strided_slice %16 {offsets = [0, 0], sizes = [2, 32], strides = [1, 1]} : vector<2x96xf32> to vector<2x32xf32>
    %19 = arith.addf %17, %18 : vector<2x32xf32>
    %20 = arith.negf %19 : vector<2x32xf32>
    %21 = math.exp %20 : vector<2x32xf32>
    %cst_19 = arith.constant 1.000000e+00 : f32
    %22 = vector.broadcast %cst_19 : f32 to vector<2x32xf32>
    %23 = arith.addf %22, %21 : vector<2x32xf32>
    %24 = arith.divf %22, %23 : vector<2x32xf32>
    %25 = vector.extract_strided_slice %13 {offsets = [0, 32], sizes = [2, 32], strides = [1, 1]} : vector<2x96xf32> to vector<2x32xf32>
    %26 = vector.extract_strided_slice %16 {offsets = [0, 32], sizes = [2, 32], strides = [1, 1]} : vector<2x96xf32> to vector<2x32xf32>
    %27 = arith.addf %25, %26 : vector<2x32xf32>
    %28 = arith.negf %27 : vector<2x32xf32>
    %29 = math.exp %28 : vector<2x32xf32>
    %cst_20 = arith.constant 1.000000e+00 : f32
    %30 = vector.broadcast %cst_20 : f32 to vector<2x32xf32>
    %31 = arith.addf %30, %29 : vector<2x32xf32>
    %32 = arith.divf %30, %31 : vector<2x32xf32>
    %33 = vector.extract_strided_slice %13 {offsets = [0, 64], sizes = [2, 32], strides = [1, 1]} : vector<2x96xf32> to vector<2x32xf32>
    %34 = vector.extract_strided_slice %16 {offsets = [0, 64], sizes = [2, 32], strides = [1, 1]} : vector<2x96xf32> to vector<2x32xf32>
    %35 = arith.mulf %24, %34 : vector<2x32xf32>
    %36 = arith.addf %33, %35 : vector<2x32xf32>
    %37 = math.tanh %36 : vector<2x32xf32>
    %cst_21 = arith.constant 1.000000e+00 : f32
    %38 = vector.broadcast %cst_21 : f32 to vector<2x32xf32>
    %39 = arith.subf %38, %32 : vector<2x32xf32>
    %40 = arith.mulf %39, %37 : vector<2x32xf32>
    %41 = arith.mulf %32, %12 : vector<2x32xf32>
    %42 = arith.addf %40, %41 : vector<2x32xf32>
    %43 = vector.extract_strided_slice %11 {offsets = [2, 0], sizes = [2, 96], strides = [1, 1]} : vector<6x96xf32> to vector<2x96xf32>
    %cst_22 = arith.constant dense<0.000000e+00> : vector<2x96xf32>
    %44 = tpu.matmul %42, %1, %cst_22 {dimension_numbers = #tpu.dot_dimension_numbers<[1], [0], [0], [1], [0, 0, 1, 1], [], []>} : vector<2x32xf32>, vector<32x96xf32>, vector<2x96xf32> -> vector<2x96xf32>
    %45 = vector.broadcast %3 : vector<1x96xf32> to vector<2x96xf32>
    %46 = arith.addf %44, %45 : vector<2x96xf32>
    %47 = vector.extract_strided_slice %43 {offsets = [0, 0], sizes = [2, 32], strides = [1, 1]} : vector<2x96xf32> to vector<2x32xf32>
    %48 = vector.extract_strided_slice %46 {offsets = [0, 0], sizes = [2, 32], strides = [1, 1]} : vector<2x96xf32> to vector<2x32xf32>
    %49 = arith.addf %47, %48 : vector<2x32xf32>
    %50 = arith.negf %49 : vector<2x32xf32>
    %51 = math.exp %50 : vector<2x32xf32>
    %cst_23 = arith.constant 1.000000e+00 : f32
    %52 = vector.broadcast %cst_23 : f32 to vector<2x32xf32>
    %53 = arith.addf %52, %51 : vector<2x32xf32>
    %54 = arith.divf %52, %53 : vector<2x32xf32>
    %55 = vector.extract_strided_slice %43 {offsets = [0, 32], sizes = [2, 32], strides = [1, 1]} : vector<2x96xf32> to vector<2x32xf32>
    %56 = vector.extract_strided_slice %46 {offsets = [0, 32], sizes = [2, 32], strides = [1, 1]} : vector<2x96xf32> to vector<2x32xf32>
    %57 = arith.addf %55, %56 : vector<2x32xf32>
    %58 = arith.negf %57 : vector<2x32xf32>
    %59 = math.exp %58 : vector<2x32xf32>
    %cst_24 = arith.constant 1.000000e+00 : f32
    %60 = vector.broadcast %cst_24 : f32 to vector<2x32xf32>
    %61 = arith.addf %60, %59 : vector<2x32xf32>
    %62 = arith.divf %60, %61 : vector<2x32xf32>
    %63 = vector.extract_strided_slice %43 {offsets = [0, 64], sizes = [2, 32], strides = [1, 1]} : vector<2x96xf32> to vector<2x32xf32>
    %64 = vector.extract_strided_slice %46 {offsets = [0, 64], sizes = [2, 32], strides = [1, 1]} : vector<2x96xf32> to vector<2x32xf32>
    %65 = arith.mulf %54, %64 : vector<2x32xf32>
    %66 = arith.addf %63, %65 : vector<2x32xf32>
    %67 = math.tanh %66 : vector<2x32xf32>
    %cst_25 = arith.constant 1.000000e+00 : f32
    %68 = vector.broadcast %cst_25 : f32 to vector<2x32xf32>
    %69 = arith.subf %68, %62 : vector<2x32xf32>
    %70 = arith.mulf %69, %67 : vector<2x32xf32>
    %71 = arith.mulf %62, %42 : vector<2x32xf32>
    %72 = arith.addf %70, %71 : vector<2x32xf32>
    %73 = vector.extract_strided_slice %11 {offsets = [4, 0], sizes = [2, 96], strides = [1, 1]} : vector<6x96xf32> to vector<2x96xf32>
    %cst_26 = arith.constant dense<0.000000e+00> : vector<2x96xf32>
    %74 = tpu.matmul %72, %1, %cst_26 {dimension_numbers = #tpu.dot_dimension_numbers<[1], [0], [0], [1], [0, 0, 1, 1], [], []>} : vector<2x32xf32>, vector<32x96xf32>, vector<2x96xf32> -> vector<2x96xf32>
    %75 = vector.broadcast %3 : vector<1x96xf32> to vector<2x96xf32>
    %76 = arith.addf %74, %75 : vector<2x96xf32>
    %77 = vector.extract_strided_slice %73 {offsets = [0, 0], sizes = [2, 32], strides = [1, 1]} : vector<2x96xf32> to vector<2x32xf32>
    %78 = vector.extract_strided_slice %76 {offsets = [0, 0], sizes = [2, 32], strides = [1, 1]} : vector<2x96xf32> to vector<2x32xf32>
    %79 = arith.addf %77, %78 : vector<2x32xf32>
    %80 = arith.negf %79 : vector<2x32xf32>
    %81 = math.exp %80 : vector<2x32xf32>
    %cst_27 = arith.constant 1.000000e+00 : f32
    %82 = vector.broadcast %cst_27 : f32 to vector<2x32xf32>
    %83 = arith.addf %82, %81 : vector<2x32xf32>
    %84 = arith.divf %82, %83 : vector<2x32xf32>
    %85 = vector.extract_strided_slice %73 {offsets = [0, 32], sizes = [2, 32], strides = [1, 1]} : vector<2x96xf32> to vector<2x32xf32>
    %86 = vector.extract_strided_slice %76 {offsets = [0, 32], sizes = [2, 32], strides = [1, 1]} : vector<2x96xf32> to vector<2x32xf32>
    %87 = arith.addf %85, %86 : vector<2x32xf32>
    %88 = arith.negf %87 : vector<2x32xf32>
    %89 = math.exp %88 : vector<2x32xf32>
    %cst_28 = arith.constant 1.000000e+00 : f32
    %90 = vector.broadcast %cst_28 : f32 to vector<2x32xf32>
    %91 = arith.addf %90, %89 : vector<2x32xf32>
    %92 = arith.divf %90, %91 : vector<2x32xf32>
    %93 = vector.extract_strided_slice %73 {offsets = [0, 64], sizes = [2, 32], strides = [1, 1]} : vector<2x96xf32> to vector<2x32xf32>
    %94 = vector.extract_strided_slice %76 {offsets = [0, 64], sizes = [2, 32], strides = [1, 1]} : vector<2x96xf32> to vector<2x32xf32>
    %95 = arith.mulf %84, %94 : vector<2x32xf32>
    %96 = arith.addf %93, %95 : vector<2x32xf32>
    %97 = math.tanh %96 : vector<2x32xf32>
    %cst_29 = arith.constant 1.000000e+00 : f32
    %98 = vector.broadcast %cst_29 : f32 to vector<2x32xf32>
    %99 = arith.subf %98, %92 : vector<2x32xf32>
    %100 = arith.mulf %99, %97 : vector<2x32xf32>
    %101 = arith.mulf %92, %72 : vector<2x32xf32>
    %102 = arith.addf %100, %101 : vector<2x32xf32>
    %cst_30 = arith.constant dense<0.000000e+00> : vector<2x16xf32>
    %103 = tpu.matmul %102, %6, %cst_30 {dimension_numbers = #tpu.dot_dimension_numbers<[1], [0], [0], [1], [0, 0, 1, 1], [], []>} : vector<2x32xf32>, vector<32x16xf32>, vector<2x16xf32> -> vector<2x16xf32>
    %104 = vector.broadcast %7 : vector<1x16xf32> to vector<2x16xf32>
    %105 = arith.addf %103, %104 : vector<2x16xf32>
    %cst_31 = arith.constant dense<0.000000e+00> : vector<2x96xf32>
    %106 = tpu.matmul %105, %0, %cst_31 {dimension_numbers = #tpu.dot_dimension_numbers<[1], [0], [0], [1], [0, 0, 1, 1], [], []>} : vector<2x16xf32>, vector<16x96xf32>, vector<2x96xf32> -> vector<2x96xf32>
    %107 = vector.broadcast %2 : vector<1x96xf32> to vector<2x96xf32>
    %108 = arith.addf %106, %107 : vector<2x96xf32>
    %cst_32 = arith.constant dense<0.000000e+00> : vector<2x96xf32>
    %109 = tpu.matmul %102, %1, %cst_32 {dimension_numbers = #tpu.dot_dimension_numbers<[1], [0], [0], [1], [0, 0, 1, 1], [], []>} : vector<2x32xf32>, vector<32x96xf32>, vector<2x96xf32> -> vector<2x96xf32>
    %110 = vector.broadcast %3 : vector<1x96xf32> to vector<2x96xf32>
    %111 = arith.addf %109, %110 : vector<2x96xf32>
    %112 = vector.extract_strided_slice %108 {offsets = [0, 0], sizes = [2, 32], strides = [1, 1]} : vector<2x96xf32> to vector<2x32xf32>
    %113 = vector.extract_strided_slice %111 {offsets = [0, 0], sizes = [2, 32], strides = [1, 1]} : vector<2x96xf32> to vector<2x32xf32>
    %114 = arith.addf %112, %113 : vector<2x32xf32>
    %115 = arith.negf %114 : vector<2x32xf32>
    %116 = math.exp %115 : vector<2x32xf32>
    %cst_33 = arith.constant 1.000000e+00 : f32
    %117 = vector.broadcast %cst_33 : f32 to vector<2x32xf32>
    %118 = arith.addf %117, %116 : vector<2x32xf32>
    %119 = arith.divf %117, %118 : vector<2x32xf32>
    %120 = vector.extract_strided_slice %108 {offsets = [0, 32], sizes = [2, 32], strides = [1, 1]} : vector<2x96xf32> to vector<2x32xf32>
    %121 = vector.extract_strided_slice %111 {offsets = [0, 32], sizes = [2, 32], strides = [1, 1]} : vector<2x96xf32> to vector<2x32xf32>
    %122 = arith.addf %120, %121 : vector<2x32xf32>
    %123 = arith.negf %122 : vector<2x32xf32>
    %124 = math.exp %123 : vector<2x32xf32>
    %cst_34 = arith.constant 1.000000e+00 : f32
    %125 = vector.broadcast %cst_34 : f32 to vector<2x32xf32>
    %126 = arith.addf %125, %124 : vector<2x32xf32>
    %127 = arith.divf %125, %126 : vector<2x32xf32>
    %128 = vector.extract_strided_slice %108 {offsets = [0, 64], sizes = [2, 32], strides = [1, 1]} : vector<2x96xf32> to vector<2x32xf32>
    %129 = vector.extract_strided_slice %111 {offsets = [0, 64], sizes = [2, 32], strides = [1, 1]} : vector<2x96xf32> to vector<2x32xf32>
    %130 = arith.mulf %119, %129 : vector<2x32xf32>
    %131 = arith.addf %128, %130 : vector<2x32xf32>
    %132 = math.tanh %131 : vector<2x32xf32>
    %cst_35 = arith.constant 1.000000e+00 : f32
    %133 = vector.broadcast %cst_35 : f32 to vector<2x32xf32>
    %134 = arith.subf %133, %127 : vector<2x32xf32>
    %135 = arith.mulf %134, %132 : vector<2x32xf32>
    %136 = arith.mulf %127, %102 : vector<2x32xf32>
    %137 = arith.addf %135, %136 : vector<2x32xf32>
    %cst_36 = arith.constant dense<0.000000e+00> : vector<2x32xf32>
    %138 = tpu.matmul %137, %4, %cst_36 {dimension_numbers = #tpu.dot_dimension_numbers<[1], [0], [0], [1], [0, 0, 1, 1], [], []>} : vector<2x32xf32>, vector<32x32xf32>, vector<2x32xf32> -> vector<2x32xf32>
    %139 = vector.broadcast %5 : vector<1x32xf32> to vector<2x32xf32>
    %140 = arith.addf %138, %139 : vector<2x32xf32>
    %c0_37 = arith.constant 0 : index
    %c1 = arith.constant 1 : index
    %c0_38 = arith.constant 0 : index
    %141 = vector.load %arg9[%c0_37, %c1, %c0_38] : memref<2x3x32xf32, #tpu.memory_space<vmem>>, vector<2x1x32xf32>
    %142 = vector.shape_cast %141 : vector<2x1x32xf32> to vector<2x32xf32>
    %143 = vector.shape_cast %140 : vector<2x32xf32> to vector<2x1x32xf32>
    tpu.vector_store %arg9[%c0_37, %c1, %c0_38], %143 {strides = array<i32>} : memref<2x3x32xf32, #tpu.memory_space<vmem>>, vector<2x1x32xf32>,
    %cst_39 = arith.constant dense<0.000000e+00> : vector<2x16xf32>
    %144 = tpu.matmul %137, %6, %cst_39 {dimension_numbers = #tpu.dot_dimension_numbers<[1], [0], [0], [1], [0, 0, 1, 1], [], []>} : vector<2x32xf32>, vector<32x16xf32>, vector<2x16xf32> -> vector<2x16xf32>
    %145 = vector.broadcast %7 : vector<1x16xf32> to vector<2x16xf32>
    %146 = arith.addf %144, %145 : vector<2x16xf32>
    %cst_40 = arith.constant dense<0.000000e+00> : vector<2x96xf32>
    %147 = tpu.matmul %146, %0, %cst_40 {dimension_numbers = #tpu.dot_dimension_numbers<[1], [0], [0], [1], [0, 0, 1, 1], [], []>} : vector<2x16xf32>, vector<16x96xf32>, vector<2x96xf32> -> vector<2x96xf32>
    %148 = vector.broadcast %2 : vector<1x96xf32> to vector<2x96xf32>
    %149 = arith.addf %147, %148 : vector<2x96xf32>
    %cst_41 = arith.constant dense<0.000000e+00> : vector<2x96xf32>
    %150 = tpu.matmul %137, %1, %cst_41 {dimension_numbers = #tpu.dot_dimension_numbers<[1], [0], [0], [1], [0, 0, 1, 1], [], []>} : vector<2x32xf32>, vector<32x96xf32>, vector<2x96xf32> -> vector<2x96xf32>
    %151 = vector.broadcast %3 : vector<1x96xf32> to vector<2x96xf32>
    %152 = arith.addf %150, %151 : vector<2x96xf32>
    %153 = vector.extract_strided_slice %149 {offsets = [0, 0], sizes = [2, 32], strides = [1, 1]} : vector<2x96xf32> to vector<2x32xf32>
    %154 = vector.extract_strided_slice %152 {offsets = [0, 0], sizes = [2, 32], strides = [1, 1]} : vector<2x96xf32> to vector<2x32xf32>
    %155 = arith.addf %153, %154 : vector<2x32xf32>
    %156 = arith.negf %155 : vector<2x32xf32>
    %157 = math.exp %156 : vector<2x32xf32>
    %cst_42 = arith.constant 1.000000e+00 : f32
    %158 = vector.broadcast %cst_42 : f32 to vector<2x32xf32>
    %159 = arith.addf %158, %157 : vector<2x32xf32>
    %160 = arith.divf %158, %159 : vector<2x32xf32>
    %161 = vector.extract_strided_slice %149 {offsets = [0, 32], sizes = [2, 32], strides = [1, 1]} : vector<2x96xf32> to vector<2x32xf32>
    %162 = vector.extract_strided_slice %152 {offsets = [0, 32], sizes = [2, 32], strides = [1, 1]} : vector<2x96xf32> to vector<2x32xf32>
    %163 = arith.addf %161, %162 : vector<2x32xf32>
    %164 = arith.negf %163 : vector<2x32xf32>
    %165 = math.exp %164 : vector<2x32xf32>
    %cst_43 = arith.constant 1.000000e+00 : f32
    %166 = vector.broadcast %cst_43 : f32 to vector<2x32xf32>
    %167 = arith.addf %166, %165 : vector<2x32xf32>
    %168 = arith.divf %166, %167 : vector<2x32xf32>
    %169 = vector.extract_strided_slice %149 {offsets = [0, 64], sizes = [2, 32], strides = [1, 1]} : vector<2x96xf32> to vector<2x32xf32>
    %170 = vector.extract_strided_slice %152 {offsets = [0, 64], sizes = [2, 32], strides = [1, 1]} : vector<2x96xf32> to vector<2x32xf32>
    %171 = arith.mulf %160, %170 : vector<2x32xf32>
    %172 = arith.addf %169, %171 : vector<2x32xf32>
    %173 = math.tanh %172 : vector<2x32xf32>
    %cst_44 = arith.constant 1.000000e+00 : f32
    %174 = vector.broadcast %cst_44 : f32 to vector<2x32xf32>
    %175 = arith.subf %174, %168 : vector<2x32xf32>
    %176 = arith.mulf %175, %173 : vector<2x32xf32>
    %177 = arith.mulf %168, %137 : vector<2x32xf32>
    %178 = arith.addf %176, %177 : vector<2x32xf32>
    %cst_45 = arith.constant dense<0.000000e+00> : vector<2x32xf32>
    %179 = tpu.matmul %178, %4, %cst_45 {dimension_numbers = #tpu.dot_dimension_numbers<[1], [0], [0], [1], [0, 0, 1, 1], [], []>} : vector<2x32xf32>, vector<32x32xf32>, vector<2x32xf32> -> vector<2x32xf32>
    %180 = vector.broadcast %5 : vector<1x32xf32> to vector<2x32xf32>
    %181 = arith.addf %179, %180 : vector<2x32xf32>
    %c0_46 = arith.constant 0 : index
    %c2 = arith.constant 2 : index
    %c0_47 = arith.constant 0 : index
    %182 = vector.load %arg9[%c0_46, %c2, %c0_47] : memref<2x3x32xf32, #tpu.memory_space<vmem>>, vector<2x1x32xf32>
    %183 = vector.shape_cast %182 : vector<2x1x32xf32> to vector<2x32xf32>
    %184 = vector.shape_cast %181 : vector<2x32xf32> to vector<2x1x32xf32>
    tpu.vector_store %arg9[%c0_46, %c2, %c0_47], %184 {strides = array<i32>} : memref<2x3x32xf32, #tpu.memory_space<vmem>>, vector<2x1x32xf32>,
    %c0_48 = arith.constant 0 : index
    %c0_49 = arith.constant 0 : index
    %c0_50 = arith.constant 0 : index
    %185 = vector.load %arg9[%c0_48, %c0_49, %c0_50] : memref<2x3x32xf32, #tpu.memory_space<vmem>>, vector<2x1x32xf32>
    %186 = vector.shape_cast %185 : vector<2x1x32xf32> to vector<2x32xf32>
    %187 = vector.shape_cast %178 : vector<2x32xf32> to vector<2x1x32xf32>
    tpu.vector_store %arg9[%c0_48, %c0_49, %c0_50], %187 {strides = array<i32>} : memref<2x3x32xf32, #tpu.memory_space<vmem>>, vector<2x1x32xf32>,
    return
  }
}

</mosaic_0001>

<llo_original>
// kernel: tpu_custom_call.1
$region0: #{tpu_custom_call.1}
  #allocation0 [shape = 'u32[]', space=smem, size = 0x4, offset = 0x4, fixed_abs, tag = 'smem constant byte address 0x4 - core index']
  #allocation1 [shape = 'u32[144,128]{1,0:T(1,128)}', space=vmem, size = 0x12000, scoped, tag = 'internal scratch']
  %s0 = inlined_call_operand.hbm [shape: f32[6,16], index: 0, kind: input, shape index: {}]
  %s1 = inlined_call_operand.vmem [shape: f32[16,96], index: 1, kind: input, shape index: {}]
  %s2 = inlined_call_operand.vmem [shape: f32[32,96], index: 2, kind: input, shape index: {}]
  %s3 = inlined_call_operand.vmem [shape: f32[1,96], index: 3, kind: input, shape index: {}]
  %s4 = inlined_call_operand.vmem [shape: f32[1,96], index: 4, kind: input, shape index: {}]
  %s5 = inlined_call_operand.hbm [shape: f32[32,32], index: 5, kind: input, shape index: {}]
  %s6 = inlined_call_operand.vmem [shape: f32[1,32], index: 6, kind: input, shape index: {}]
  %s7 = inlined_call_operand.vmem [shape: f32[32,16], index: 7, kind: input, shape index: {}]
  %s8 = inlined_call_operand.vmem [shape: f32[1,16], index: 8, kind: input, shape index: {}]
  %s9 = inlined_call_operand.vmem [shape: f32[2,3,32], index: 9, kind: output, shape index: {}]
  %s10 = sld [smem:[#allocation0]]
  $region54: #{tpu_custom_call.1} parent=0
    _
  %s12 = ssub.s32 1, %s10
  %s13 = scalar_select 0, %s12, %s10
  $region1: #{tpu_custom_call.1} parent=0
    #allocation2 [shape = 'u8[4096]{0}', space=vmem, size = 0x1000, scoped, tag = 'input window, operand 0, single buffered']
    #allocation3 [shape = 's32[1]{0}', space=sflag, size = 0x4, scoped, tag = 'scoped memory for tpu_custom_call.1']
    #allocation4 [shape = 'u8[16384]{0}', space=vmem, size = 0x4000, scoped, tag = 'input window, operand 5, single buffered']
    #allocation5 [shape = 's32[1]{0}', space=sflag, size = 0x4, scoped, tag = 'scoped memory for tpu_custom_call.1']
    %14 = vsyncpa [#allocation3], 0
    %15 = vsyncpa [#allocation5], 0
    // Predicated region
    $region2: #{tpu_custom_call.1} parent=1 // pred_check
      _
    $region3: #{tpu_custom_call.1} parent=1 // pred_check_branch
      %17 = sbr.rel (0) target = $region5
    $region4: #{tpu_custom_call.1} parent=1 // pred_region
      %s19 = ssub.s32 128, 128
      %20 = vsyncadd [#allocation3], %s19
      %s22 = sshll.u32 [#allocation2], 4
      %s23 = int_to_ptr.vmem [resolvable:$true] %s22
      %25 = dma.hbm_to_vmem [thread:$0]  %s0, 128, %s23, [#allocation3]
    $region5: #{tpu_custom_call.1} parent=1 // pred_fallthru
      _
    // Predicated region
    $region6: #{tpu_custom_call.1} parent=1 // pred_check
      _
    $region7: #{tpu_custom_call.1} parent=1 // pred_check_branch
      %27 = sbr.rel (0) target = $region9
    $region8: #{tpu_custom_call.1} parent=1 // pred_region
      _
    $region9: #{tpu_custom_call.1} parent=1 // pred_fallthru
      _
    // Predicated region
    $region10: #{tpu_custom_call.1} parent=1 // pred_check
      _
    $region11: #{tpu_custom_call.1} parent=1 // pred_check_branch
      %29 = sbr.rel (0) target = $region13
    $region12: #{tpu_custom_call.1} parent=1 // pred_region
      _
    $region13: #{tpu_custom_call.1} parent=1 // pred_fallthru
      _
    // Predicated region
    $region14: #{tpu_custom_call.1} parent=1 // pred_check
      _
    $region15: #{tpu_custom_call.1} parent=1 // pred_check_branch
      %31 = sbr.rel (0) target = $region17
    $region16: #{tpu_custom_call.1} parent=1 // pred_region
      _
    $region17: #{tpu_custom_call.1} parent=1 // pred_fallthru
      _
    // Predicated region
    $region18: #{tpu_custom_call.1} parent=1 // pred_check
      _
    $region19: #{tpu_custom_call.1} parent=1 // pred_check_branch
      %33 = sbr.rel (0) target = $region21
    $region20: #{tpu_custom_call.1} parent=1 // pred_region
      _
    $region21: #{tpu_custom_call.1} parent=1 // pred_fallthru
      _
    // Predicated region
    $region22: #{tpu_custom_call.1} parent=1 // pred_check
      _
    $region23: #{tpu_custom_call.1} parent=1 // pred_check_branch
      %35 = sbr.rel (0) target = $region25
    $region24: #{tpu_custom_call.1} parent=1 // pred_region
      %s37 = ssub.s32 512, 512
      %38 = vsyncadd [#allocation5], %s37
      %s39 = sshll.u32 [#allocation4], 4
      %s40 = int_to_ptr.vmem [resolvable:$true] %s39
      %45 = dma.hbm_to_vmem [thread:$0]  %s5, 512, %s40, [#allocation5], 128, 128, 8
    $region25: #{tpu_custom_call.1} parent=1 // pred_fallthru
      _
    // Predicated region
    $region26: #{tpu_custom_call.1} parent=1 // pred_check
      _
    $region27: #{tpu_custom_call.1} parent=1 // pred_check_branch
      %47 = sbr.rel (0) target = $region29
    $region28: #{tpu_custom_call.1} parent=1 // pred_region
      _
    $region29: #{tpu_custom_call.1} parent=1 // pred_fallthru
      _
    // Predicated region
    $region30: #{tpu_custom_call.1} parent=1 // pred_check
      _
    $region31: #{tpu_custom_call.1} parent=1 // pred_check_branch
      %49 = sbr.rel (0) target = $region33
    $region32: #{tpu_custom_call.1} parent=1 // pred_region
      _
    $region33: #{tpu_custom_call.1} parent=1 // pred_fallthru
      _
    // Predicated region
    $region34: #{tpu_custom_call.1} parent=1 // pred_check
      _
    $region35: #{tpu_custom_call.1} parent=1 // pred_check_branch
      %51 = sbr.rel (0) target = $region37
    $region36: #{tpu_custom_call.1} parent=1 // pred_region
      _
    $region37: #{tpu_custom_call.1} parent=1 // pred_fallthru
      _
    // Predicated region
    $region38: #{tpu_custom_call.1} parent=1 // pred_check
      _
    $region39: #{tpu_custom_call.1} parent=1 // pred_check_branch
      %53 = sbr.rel (0) target = $region41
    $region40: #{tpu_custom_call.1} parent=1 // pred_region
      %54 = dma.done [#allocation3], 128
    $region41: #{tpu_custom_call.1} parent=1 // pred_fallthru
      _
    // Predicated region
    $region42: #{tpu_custom_call.1} parent=1 // pred_check
      _
    $region43: #{tpu_custom_call.1} parent=1 // pred_check_branch
      %56 = sbr.rel (0) target = $region45
    $region44: #{tpu_custom_call.1} parent=1 // pred_region
      %57 = dma.done [#allocation5], 512
    $region45: #{tpu_custom_call.1} parent=1 // pred_fallthru
      _
    %v58 = vld [vmem:[%s1] sm:$0xff]
    %v59 = vld [vmem:[%s1 + $0x8] sm:$0xff]
    %v60 = vld [vmem:[%s2] sm:$0xff]
    %v61 = vld [vmem:[%s2 + $0x8] sm:$0xff]
    %v62 = vld [vmem:[%s2 + $0x10] sm:$0xff]
    %v63 = vld [vmem:[%s2 + $0x18] sm:$0xff]
    %v64 = vld [vmem:[%s3] sm:$0x1]
    %v65 = vld [vmem:[%s4] sm:$0x1]
    %v66 = vld [vmem:[#allocation4] sm:$0xff]
    %v67 = vld [vmem:[#allocation4 + $0x8] sm:$0xff]
    %v68 = vld [vmem:[#allocation4 + $0x10] sm:$0xff]
    %v69 = vld [vmem:[#allocation4 + $0x18] sm:$0xff]
    %v70 = vld [vmem:[%s6] sm:$0x1]
    %v71 = vld [vmem:[%s7] sm:$0xff]
    %v72 = vld [vmem:[%s7 + $0x8] sm:$0xff]
    %v73 = vld [vmem:[%s7 + $0x10] sm:$0xff]
    %v74 = vld [vmem:[%s7 + $0x18] sm:$0xff]
    %v75 = vld [vmem:[%s8] sm:$0x1]
    %v76 = vld [vmem:[#allocation2] sm:$0x3f]
    %v78 = vlaneseq
    %v79 = vshrl.u32 %v78, 7
    %v80 = vsub.s32 0, %v79
    %v81 = vrot.slane %v64, %v80
    %vm83 = vcmask 130048
    %v85 = vsel %vm83, %v76, 0
    %87 = vmatprep.subr.mxu0 0.0
    %88 = vmatpush1.msra.mxu0 0.0
    %89 = vmatprep.subr.mxu0 0.0
    %90 = vmatpush1.msra.mxu0 0.0
    %91 = vmatprep.subr.mxu0 0.0
    %92 = vmatpush1.msra.mxu0 0.0
    %93 = vmatprep.subr.mxu0 0.0
    %94 = vmatpush1.msra.mxu0 0.0
    %95 = vmatprep.subr.mxu0 0.0
    %96 = vmatpush1.msra.mxu0 0.0
    %97 = vmatprep.subr.mxu0 0.0
    %98 = vmatpush1.msra.mxu0 0.0
    %99 = vmatprep.subr.mxu0 0.0
    %100 = vmatpush1.msra.mxu0 0.0
    %101 = vmatprep.subr.mxu0 0.0
    %102 = vmatpush1.msra.mxu0 0.0
    %103 = vmatprep.subr.mxu0 0.0
    %104 = vmatpush1.msra.mxu0 0.0
    %105 = vmatprep.subr.mxu0 0.0
    %106 = vmatpush1.msra.mxu0 0.0
    %107 = vmatprep.subr.mxu0 0.0
    %108 = vmatpush1.msra.mxu0 0.0
    %109 = vmatprep.subr.mxu0 0.0
    %110 = vmatpush1.msra.mxu0 0.0
    %111 = vmatprep.subr.mxu0 0.0
    %112 = vmatpush1.msra.mxu0 0.0
    %113 = vmatprep.subr.mxu0 0.0
    %114 = vmatpush1.msra.mxu0 0.0
    %115 = vmatprep.subr.mxu0 0.0
    %116 = vmatpush1.msra.mxu0 %v59
    %117 = vmatprep.subr.mxu0 0.0
    %118 = vmatpush1.msra.mxu0 %v58
    %119 = vmatprep.subr.mxu0 0.0
    %120 = vmatpush2.msra.mxu0 0.0
    %121 = vmatprep.subr.mxu0 0.0
    %122 = vmatpush2.msra.mxu0 0.0
    %123 = vmatprep.subr.mxu0 0.0
    %124 = vmatpush2.msra.mxu0 0.0
    %125 = vmatprep.subr.mxu0 0.0
    %126 = vmatpush2.msra.mxu0 0.0
    %127 = vmatprep.subr.mxu0 0.0
    %128 = vmatpush2.msra.mxu0 0.0
    %129 = vmatprep.subr.mxu0 0.0
    %130 = vmatpush2.msra.mxu0 0.0
    %131 = vmatprep.subr.mxu0 0.0
    %132 = vmatpush2.msra.mxu0 0.0
    %133 = vmatprep.subr.mxu0 0.0
    %134 = vmatpush2.msra.mxu0 0.0
    %135 = vmatprep.subr.mxu0 0.0
    %136 = vmatpush2.msra.mxu0 0.0
    %137 = vmatprep.subr.mxu0 0.0
    %138 = vmatpush2.msra.mxu0 0.0
    %139 = vmatprep.subr.mxu0 0.0
    %140 = vmatpush2.msra.mxu0 0.0
    %141 = vmatprep.subr.mxu0 0.0
    %142 = vmatpush2.msra.mxu0 0.0
    %143 = vmatprep.subr.mxu0 0.0
    %144 = vmatpush2.msra.mxu0 0.0
    %145 = vmatprep.subr.mxu0 0.0
    %146 = vmatpush2.msra.mxu0 0.0
    %147 = vmatprep.subr.mxu0 0.0
    %148 = vmatpush2.msra.mxu0 0.0
    %149 = vmatprep.subr.mxu0 0.0
    %150 = vmatpush2.msra.mxu0 0.0
    %151 = vmatprep.mubr.f32.mxu0 0.0
    %152 = vmatmul.mubr.f32.gmra.mxu0 %v85
    %v153 = vpop.f32.mrf.mxu0
    %v154 = vadd.f32 %v81, %v153
    %v155 = vpop.f32.mrf.mxu0
    %156 = vdwg.mxu0
    %v158 = vlaneseq
    %v159 = vshrl.u32 %v158, 7
    %v160 = vsub.s32 0, %v159
    %v161 = vrot.slane %v65, %v160
    %vm163 = vcmask 261120
    %v165 = vsel %vm163, 0.0, 0
    %167 = vmatprep.subr.mxu0 0.0
    %168 = vmatpush1.msra.mxu0 0.0
    %169 = vmatprep.subr.mxu0 0.0
    %170 = vmatpush1.msra.mxu0 0.0
    %171 = vmatprep.subr.mxu0 0.0
    %172 = vmatpush1.msra.mxu0 0.0
    %173 = vmatprep.subr.mxu0 0.0
    %174 = vmatpush1.msra.mxu0 0.0
    %175 = vmatprep.subr.mxu0 0.0
    %176 = vmatpush1.msra.mxu0 0.0
    %177 = vmatprep.subr.mxu0 0.0
    %178 = vmatpush1.msra.mxu0 0.0
    %179 = vmatprep.subr.mxu0 0.0
    %180 = vmatpush1.msra.mxu0 0.0
    %181 = vmatprep.subr.mxu0 0.0
    %182 = vmatpush1.msra.mxu0 0.0
    %183 = vmatprep.subr.mxu0 0.0
    %184 = vmatpush1.msra.mxu0 0.0
    %185 = vmatprep.subr.mxu0 0.0
    %186 = vmatpush1.msra.mxu0 0.0
    %187 = vmatprep.subr.mxu0 0.0
    %188 = vmatpush1.msra.mxu0 0.0
    %189 = vmatprep.subr.mxu0 0.0
    %190 = vmatpush1.msra.mxu0 0.0
    %191 = vmatprep.subr.mxu0 0.0
    %192 = vmatpush1.msra.mxu0 %v63
    %193 = vmatprep.subr.mxu0 0.0
    %194 = vmatpush1.msra.mxu0 %v62
    %195 = vmatprep.subr.mxu0 0.0
    %196 = vmatpush1.msra.mxu0 %v61
    %197 = vmatprep.subr.mxu0 0.0
    %198 = vmatpush1.msra.mxu0 %v60
    %199 = vmatprep.subr.mxu0 0.0
    %200 = vmatpush2.msra.mxu0 0.0
    %201 = vmatprep.subr.mxu0 0.0
    %202 = vmatpush2.msra.mxu0 0.0
    %203 = vmatprep.subr.mxu0 0.0
    %204 = vmatpush2.msra.mxu0 0.0
    %205 = vmatprep.subr.mxu0 0.0
    %206 = vmatpush2.msra.mxu0 0.0
    %207 = vmatprep.subr.mxu0 0.0
    %208 = vmatpush2.msra.mxu0 0.0
    %209 = vmatprep.subr.mxu0 0.0
    %210 = vmatpush2.msra.mxu0 0.0
    %211 = vmatprep.subr.mxu0 0.0
    %212 = vmatpush2.msra.mxu0 0.0
    %213 = vmatprep.subr.mxu0 0.0
    %214 = vmatpush2.msra.mxu0 0.0
    %215 = vmatprep.subr.mxu0 0.0
    %216 = vmatpush2.msra.mxu0 0.0
    %217 = vmatprep.subr.mxu0 0.0
    %218 = vmatpush2.msra.mxu0 0.0
    %219 = vmatprep.subr.mxu0 0.0
    %220 = vmatpush2.msra.mxu0 0.0
    %221 = vmatprep.subr.mxu0 0.0
    %222 = vmatpush2.msra.mxu0 0.0
    %223 = vmatprep.subr.mxu0 0.0
    %224 = vmatpush2.msra.mxu0 0.0
    %225 = vmatprep.subr.mxu0 0.0
    %226 = vmatpush2.msra.mxu0 0.0
    %227 = vmatprep.subr.mxu0 0.0
    %228 = vmatpush2.msra.mxu0 0.0
    %229 = vmatprep.subr.mxu0 0.0
    %230 = vmatpush2.msra.mxu0 0.0
    %231 = vmatprep.mubr.f32.mxu0 0.0
    %232 = vmatmul.mubr.f32.gmra.mxu0 %v165
    %v233 = vpop.f32.mrf.mxu0
    %v234 = vadd.f32 %v161, %v233
    %v235 = vpop.f32.mrf.mxu0
    %236 = vdwg.mxu0
    %v237 = vadd.f32 %v154, %v234
    %v238 = vxor.u32 %v237, 2147483648
    %v239 = vmul.f32 %v238, 1.442695
    %v240 = vpow.pop %v239
    %v241 = vadd.f32 %v240, 1.0
    %v242 = vrcp.pop %v241
    %v243 = vmul.f32 1.0, %v242
    %245 = vrot.lane.b32.xlu0 %v234, 64
    %v246 = vpop.permute.xlu0 %245
    %v248 = vmul.f32 %v243, %v246
    %250 = vrot.lane.b32.xlu0 %v248, 64
    %v251 = vpop.permute.xlu0 %250
    %v253 = vadd.f32 %v154, %v251
    %v254 = vtanh.pop %v253
    %v255 = vsub.f32 1.0, %v243
    %257 = vrot.lane.b32.xlu0 %v254, 96
    %v258 = vpop.permute.xlu0 %257
    %v260 = vmul.f32 %v255, %v258
    %v261 = vmul.f32 %v243, 0.0
    %v262 = vadd.f32 %v260, %v261
    %264 = vrot.lane.b32.xlu0 %v262, 96
    %v265 = vpop.permute.xlu0 %264
    %v266 = vsel %vm163, %v265, 0
    %268 = vmatprep.subr.mxu0 0.0
    %269 = vmatpush1.msra.mxu0 0.0
    %270 = vmatprep.subr.mxu0 0.0
    %271 = vmatpush1.msra.mxu0 0.0
    %272 = vmatprep.subr.mxu0 0.0
    %273 = vmatpush1.msra.mxu0 0.0
    %274 = vmatprep.subr.mxu0 0.0
    %275 = vmatpush1.msra.mxu0 0.0
    %276 = vmatprep.subr.mxu0 0.0
    %277 = vmatpush1.msra.mxu0 0.0
    %278 = vmatprep.subr.mxu0 0.0
    %279 = vmatpush1.msra.mxu0 0.0
    %280 = vmatprep.subr.mxu0 0.0
    %281 = vmatpush1.msra.mxu0 0.0
    %282 = vmatprep.subr.mxu0 0.0
    %283 = vmatpush1.msra.mxu0 0.0
    %284 = vmatprep.subr.mxu0 0.0
    %285 = vmatpush1.msra.mxu0 0.0
    %286 = vmatprep.subr.mxu0 0.0
    %287 = vmatpush1.msra.mxu0 0.0
    %288 = vmatprep.subr.mxu0 0.0
    %289 = vmatpush1.msra.mxu0 0.0
    %290 = vmatprep.subr.mxu0 0.0
    %291 = vmatpush1.msra.mxu0 0.0
    %292 = vmatprep.subr.mxu0 0.0
    %293 = vmatpush1.msra.mxu0 %v63
    %294 = vmatprep.subr.mxu0 0.0
    %295 = vmatpush1.msra.mxu0 %v62
    %296 = vmatprep.subr.mxu0 0.0
    %297 = vmatpush1.msra.mxu0 %v61
    %298 = vmatprep.subr.mxu0 0.0
    %299 = vmatpush1.msra.mxu0 %v60
    %300 = vmatprep.subr.mxu0 0.0
    %301 = vmatpush2.msra.mxu0 0.0
    %302 = vmatprep.subr.mxu0 0.0
    %303 = vmatpush2.msra.mxu0 0.0
    %304 = vmatprep.subr.mxu0 0.0
    %305 = vmatpush2.msra.mxu0 0.0
    %306 = vmatprep.subr.mxu0 0.0
    %307 = vmatpush2.msra.mxu0 0.0
    %308 = vmatprep.subr.mxu0 0.0
    %309 = vmatpush2.msra.mxu0 0.0
    %310 = vmatprep.subr.mxu0 0.0
    %311 = vmatpush2.msra.mxu0 0.0
    %312 = vmatprep.subr.mxu0 0.0
    %313 = vmatpush2.msra.mxu0 0.0
    %314 = vmatprep.subr.mxu0 0.0
    %315 = vmatpush2.msra.mxu0 0.0
    %316 = vmatprep.subr.mxu0 0.0
    %317 = vmatpush2.msra.mxu0 0.0
    %318 = vmatprep.subr.mxu0 0.0
    %319 = vmatpush2.msra.mxu0 0.0
    %320 = vmatprep.subr.mxu0 0.0
    %321 = vmatpush2.msra.mxu0 0.0
    %322 = vmatprep.subr.mxu0 0.0
    %323 = vmatpush2.msra.mxu0 0.0
    %324 = vmatprep.subr.mxu0 0.0
    %325 = vmatpush2.msra.mxu0 0.0
    %326 = vmatprep.subr.mxu0 0.0
    %327 = vmatpush2.msra.mxu0 0.0
    %328 = vmatprep.subr.mxu0 0.0
    %329 = vmatpush2.msra.mxu0 0.0
    %330 = vmatprep.subr.mxu0 0.0
    %331 = vmatpush2.msra.mxu0 0.0
    %332 = vmatprep.mubr.f32.mxu0 0.0
    %333 = vmatmul.mubr.f32.gmra.mxu0 %v266
    %v334 = vpop.f32.mrf.mxu0
    %v335 = vadd.f32 %v161, %v334
    %v336 = vpop.f32.mrf.mxu0
    %337 = vdwg.mxu0
    %v339 = vrot.slane %v335, 6
    %v341 = vadd.f32 %v154, %v339
    %v342 = vxor.u32 %v341, 2147483648
    %v343 = vmul.f32 %v342, 1.442695
    %v344 = vpow.pop %v343
    %v345 = vadd.f32 %v344, 1.0
    %v346 = vrcp.pop %v345
    %v347 = vmul.f32 1.0, %v346
    %348 = vrot.lane.b32.xlu0 %v339, 64
    %v349 = vpop.permute.xlu0 %348
    %v351 = vmul.f32 %v347, %v349
    %353 = vrot.lane.b32.xlu0 %v351, 64
    %v354 = vpop.permute.xlu0 %353
    %v356 = vadd.f32 %v154, %v354
    %v357 = vtanh.pop %v356
    %v358 = vsub.f32 1.0, %v347
    %360 = vrot.lane.b32.xlu0 %v357, 96
    %v361 = vpop.permute.xlu0 %360
    %v363 = vmul.f32 %v358, %v361
    %v364 = vrot.slane %v262, 6
    %v366 = vmul.f32 %v347, %v364
    %v367 = vadd.f32 %v363, %v366
    %v369 = vrot.slane %v367, 2
    %370 = vrot.lane.b32.xlu0 %v369, 96
    %v371 = vpop.permute.xlu0 %370
    %v372 = vsel %vm163, %v371, 0
    %374 = vmatprep.subr.mxu0 0.0
    %375 = vmatpush1.msra.mxu0 0.0
    %376 = vmatprep.subr.mxu0 0.0
    %377 = vmatpush1.msra.mxu0 0.0
    %378 = vmatprep.subr.mxu0 0.0
    %379 = vmatpush1.msra.mxu0 0.0
    %380 = vmatprep.subr.mxu0 0.0
    %381 = vmatpush1.msra.mxu0 0.0
    %382 = vmatprep.subr.mxu0 0.0
    %383 = vmatpush1.msra.mxu0 0.0
    %384 = vmatprep.subr.mxu0 0.0
    %385 = vmatpush1.msra.mxu0 0.0
    %386 = vmatprep.subr.mxu0 0.0
    %387 = vmatpush1.msra.mxu0 0.0
    %388 = vmatprep.subr.mxu0 0.0
    %389 = vmatpush1.msra.mxu0 0.0
    %390 = vmatprep.subr.mxu0 0.0
    %391 = vmatpush1.msra.mxu0 0.0
    %392 = vmatprep.subr.mxu0 0.0
    %393 = vmatpush1.msra.mxu0 0.0
    %394 = vmatprep.subr.mxu0 0.0
    %395 = vmatpush1.msra.mxu0 0.0
    %396 = vmatprep.subr.mxu0 0.0
    %397 = vmatpush1.msra.mxu0 0.0
    %398 = vmatprep.subr.mxu0 0.0
    %399 = vmatpush1.msra.mxu0 %v63
    %400 = vmatprep.subr.mxu0 0.0
    %401 = vmatpush1.msra.mxu0 %v62
    %402 = vmatprep.subr.mxu0 0.0
    %403 = vmatpush1.msra.mxu0 %v61
    %404 = vmatprep.subr.mxu0 0.0
    %405 = vmatpush1.msra.mxu0 %v60
    %406 = vmatprep.subr.mxu0 0.0
    %407 = vmatpush2.msra.mxu0 0.0
    %408 = vmatprep.subr.mxu0 0.0
    %409 = vmatpush2.msra.mxu0 0.0
    %410 = vmatprep.subr.mxu0 0.0
    %411 = vmatpush2.msra.mxu0 0.0
    %412 = vmatprep.subr.mxu0 0.0
    %413 = vmatpush2.msra.mxu0 0.0
    %414 = vmatprep.subr.mxu0 0.0
    %415 = vmatpush2.msra.mxu0 0.0
    %416 = vmatprep.subr.mxu0 0.0
    %417 = vmatpush2.msra.mxu0 0.0
    %418 = vmatprep.subr.mxu0 0.0
    %419 = vmatpush2.msra.mxu0 0.0
    %420 = vmatprep.subr.mxu0 0.0
    %421 = vmatpush2.msra.mxu0 0.0
    %422 = vmatprep.subr.mxu0 0.0
    %423 = vmatpush2.msra.mxu0 0.0
    %424 = vmatprep.subr.mxu0 0.0
    %425 = vmatpush2.msra.mxu0 0.0
    %426 = vmatprep.subr.mxu0 0.0
    %427 = vmatpush2.msra.mxu0 0.0
    %428 = vmatprep.subr.mxu0 0.0
    %429 = vmatpush2.msra.mxu0 0.0
    %430 = vmatprep.subr.mxu0 0.0
    %431 = vmatpush2.msra.mxu0 0.0
    %432 = vmatprep.subr.mxu0 0.0
    %433 = vmatpush2.msra.mxu0 0.0
    %434 = vmatprep.subr.mxu0 0.0
    %435 = vmatpush2.msra.mxu0 0.0
    %436 = vmatprep.subr.mxu0 0.0
    %437 = vmatpush2.msra.mxu0 0.0
    %438 = vmatprep.mubr.f32.mxu0 0.0
    %439 = vmatmul.mubr.f32.gmra.mxu0 %v372
    %v440 = vpop.f32.mrf.mxu0
    %v441 = vadd.f32 %v161, %v440
    %v442 = vpop.f32.mrf.mxu0
    %443 = vdwg.mxu0
    %v445 = vrot.slane %v441, 4
    %v447 = vadd.f32 %v154, %v445
    %v448 = vxor.u32 %v447, 2147483648
    %v449 = vmul.f32 %v448, 1.442695
    %v450 = vpow.pop %v449
    %v451 = vadd.f32 %v450, 1.0
    %v452 = vrcp.pop %v451
    %v453 = vmul.f32 1.0, %v452
    %454 = vrot.lane.b32.xlu0 %v445, 64
    %v455 = vpop.permute.xlu0 %454
    %v457 = vmul.f32 %v453, %v455
    %459 = vrot.lane.b32.xlu0 %v457, 64
    %v460 = vpop.permute.xlu0 %459
    %v462 = vadd.f32 %v154, %v460
    %v463 = vtanh.pop %v462
    %v464 = vsub.f32 1.0, %v453
    %466 = vrot.lane.b32.xlu0 %v463, 96
    %v467 = vpop.permute.xlu0 %466
    %v469 = vmul.f32 %v464, %v467
    %v470 = vrot.slane %v367, 6
    %v472 = vmul.f32 %v453, %v470
    %v473 = vadd.f32 %v469, %v472
    %v475 = vlaneseq
    %v476 = vshrl.u32 %v475, 7
    %v477 = vsub.s32 0, %v476
    %v478 = vrot.slane %v75, %v477
    %v481 = vrot.slane %v473, 4
    %482 = vrot.lane.b32.xlu0 %v481, 96
    %v483 = vpop.permute.xlu0 %482
    %v484 = vsel %vm163, %v483, 0
    %486 = vmatprep.subr.mxu0 0.0
    %487 = vmatpush1.msra.mxu0 0.0
    %488 = vmatprep.subr.mxu0 0.0
    %489 = vmatpush1.msra.mxu0 0.0
    %490 = vmatprep.subr.mxu0 0.0
    %491 = vmatpush1.msra.mxu0 0.0
    %492 = vmatprep.subr.mxu0 0.0
    %493 = vmatpush1.msra.mxu0 0.0
    %494 = vmatprep.subr.mxu0 0.0
    %495 = vmatpush1.msra.mxu0 0.0
    %496 = vmatprep.subr.mxu0 0.0
    %497 = vmatpush1.msra.mxu0 0.0
    %498 = vmatprep.subr.mxu0 0.0
    %499 = vmatpush1.msra.mxu0 0.0
    %500 = vmatprep.subr.mxu0 0.0
    %501 = vmatpush1.msra.mxu0 0.0
    %502 = vmatprep.subr.mxu0 0.0
    %503 = vmatpush1.msra.mxu0 0.0
    %504 = vmatprep.subr.mxu0 0.0
    %505 = vmatpush1.msra.mxu0 0.0
    %506 = vmatprep.subr.mxu0 0.0
    %507 = vmatpush1.msra.mxu0 0.0
    %508 = vmatprep.subr.mxu0 0.0
    %509 = vmatpush1.msra.mxu0 0.0
    %510 = vmatprep.subr.mxu0 0.0
    %511 = vmatpush1.msra.mxu0 %v74
    %512 = vmatprep.subr.mxu0 0.0
    %513 = vmatpush1.msra.mxu0 %v73
    %514 = vmatprep.subr.mxu0 0.0
    %515 = vmatpush1.msra.mxu0 %v72
    %516 = vmatprep.subr.mxu0 0.0
    %517 = vmatpush1.msra.mxu0 %v71
    %518 = vmatprep.subr.mxu0 0.0
    %519 = vmatpush2.msra.mxu0 0.0
    %520 = vmatprep.subr.mxu0 0.0
    %521 = vmatpush2.msra.mxu0 0.0
    %522 = vmatprep.subr.mxu0 0.0
    %523 = vmatpush2.msra.mxu0 0.0
    %524 = vmatprep.subr.mxu0 0.0
    %525 = vmatpush2.msra.mxu0 0.0
    %526 = vmatprep.subr.mxu0 0.0
    %527 = vmatpush2.msra.mxu0 0.0
    %528 = vmatprep.subr.mxu0 0.0
    %529 = vmatpush2.msra.mxu0 0.0
    %530 = vmatprep.subr.mxu0 0.0
    %531 = vmatpush2.msra.mxu0 0.0
    %532 = vmatprep.subr.mxu0 0.0
    %533 = vmatpush2.msra.mxu0 0.0
    %534 = vmatprep.subr.mxu0 0.0
    %535 = vmatpush2.msra.mxu0 0.0
    %536 = vmatprep.subr.mxu0 0.0
    %537 = vmatpush2.msra.mxu0 0.0
    %538 = vmatprep.subr.mxu0 0.0
    %539 = vmatpush2.msra.mxu0 0.0
    %540 = vmatprep.subr.mxu0 0.0
    %541 = vmatpush2.msra.mxu0 0.0
    %542 = vmatprep.subr.mxu0 0.0
    %543 = vmatpush2.msra.mxu0 0.0
    %544 = vmatprep.subr.mxu0 0.0
    %545 = vmatpush2.msra.mxu0 0.0
    %546 = vmatprep.subr.mxu0 0.0
    %547 = vmatpush2.msra.mxu0 0.0
    %548 = vmatprep.subr.mxu0 0.0
    %549 = vmatpush2.msra.mxu0 0.0
    %550 = vmatprep.mubr.f32.mxu0 0.0
    %551 = vmatmul.mubr.f32.gmra.mxu0 %v484
    %v552 = vpop.f32.mrf.mxu0
    %v553 = vadd.f32 %v478, %v552
    %v554 = vpop.f32.mrf.mxu0
    %555 = vdwg.mxu0
    %v557 = vsel %vm83, %v553, 0
    %559 = vmatprep.subr.mxu0 0.0
    %560 = vmatpush1.msra.mxu0 0.0
    %561 = vmatprep.subr.mxu0 0.0
    %562 = vmatpush1.msra.mxu0 0.0
    %563 = vmatprep.subr.mxu0 0.0
    %564 = vmatpush1.msra.mxu0 0.0
    %565 = vmatprep.subr.mxu0 0.0
    %566 = vmatpush1.msra.mxu0 0.0
    %567 = vmatprep.subr.mxu0 0.0
    %568 = vmatpush1.msra.mxu0 0.0
    %569 = vmatprep.subr.mxu0 0.0
    %570 = vmatpush1.msra.mxu0 0.0
    %571 = vmatprep.subr.mxu0 0.0
    %572 = vmatpush1.msra.mxu0 0.0
    %573 = vmatprep.subr.mxu0 0.0
    %574 = vmatpush1.msra.mxu0 0.0
    %575 = vmatprep.subr.mxu0 0.0
    %576 = vmatpush1.msra.mxu0 0.0
    %577 = vmatprep.subr.mxu0 0.0
    %578 = vmatpush1.msra.mxu0 0.0
    %579 = vmatprep.subr.mxu0 0.0
    %580 = vmatpush1.msra.mxu0 0.0
    %581 = vmatprep.subr.mxu0 0.0
    %582 = vmatpush1.msra.mxu0 0.0
    %583 = vmatprep.subr.mxu0 0.0
    %584 = vmatpush1.msra.mxu0 0.0
    %585 = vmatprep.subr.mxu0 0.0
    %586 = vmatpush1.msra.mxu0 0.0
    %587 = vmatprep.subr.mxu0 0.0
    %588 = vmatpush1.msra.mxu0 %v59
    %589 = vmatprep.subr.mxu0 0.0
    %590 = vmatpush1.msra.mxu0 %v58
    %591 = vmatprep.subr.mxu0 0.0
    %592 = vmatpush2.msra.mxu0 0.0
    %593 = vmatprep.subr.mxu0 0.0
    %594 = vmatpush2.msra.mxu0 0.0
    %595 = vmatprep.subr.mxu0 0.0
    %596 = vmatpush2.msra.mxu0 0.0
    %597 = vmatprep.subr.mxu0 0.0
    %598 = vmatpush2.msra.mxu0 0.0
    %599 = vmatprep.subr.mxu0 0.0
    %600 = vmatpush2.msra.mxu0 0.0
    %601 = vmatprep.subr.mxu0 0.0
    %602 = vmatpush2.msra.mxu0 0.0
    %603 = vmatprep.subr.mxu0 0.0
    %604 = vmatpush2.msra.mxu0 0.0
    %605 = vmatprep.subr.mxu0 0.0
    %606 = vmatpush2.msra.mxu0 0.0
    %607 = vmatprep.subr.mxu0 0.0
    %608 = vmatpush2.msra.mxu0 0.0
    %609 = vmatprep.subr.mxu0 0.0
    %610 = vmatpush2.msra.mxu0 0.0
    %611 = vmatprep.subr.mxu0 0.0
    %612 = vmatpush2.msra.mxu0 0.0
    %613 = vmatprep.subr.mxu0 0.0
    %614 = vmatpush2.msra.mxu0 0.0
    %615 = vmatprep.subr.mxu0 0.0
    %616 = vmatpush2.msra.mxu0 0.0
    %617 = vmatprep.subr.mxu0 0.0
    %618 = vmatpush2.msra.mxu0 0.0
    %619 = vmatprep.subr.mxu0 0.0
    %620 = vmatpush2.msra.mxu0 0.0
    %621 = vmatprep.subr.mxu0 0.0
    %622 = vmatpush2.msra.mxu0 0.0
    %623 = vmatprep.mubr.f32.mxu0 0.0
    %624 = vmatmul.mubr.f32.gmra.mxu0 %v557
    %v625 = vpop.f32.mrf.mxu0
    %v626 = vadd.f32 %v81, %v625
    %v627 = vpop.f32.mrf.mxu0
    %628 = vdwg.mxu0
    %629 = vmatprep.subr.mxu0 0.0
    %630 = vmatpush1.msra.mxu0 0.0
    %631 = vmatprep.subr.mxu0 0.0
    %632 = vmatpush1.msra.mxu0 0.0
    %633 = vmatprep.subr.mxu0 0.0
    %634 = vmatpush1.msra.mxu0 0.0
    %635 = vmatprep.subr.mxu0 0.0
    %636 = vmatpush1.msra.mxu0 0.0
    %637 = vmatprep.subr.mxu0 0.0
    %638 = vmatpush1.msra.mxu0 0.0
    %639 = vmatprep.subr.mxu0 0.0
    %640 = vmatpush1.msra.mxu0 0.0
    %641 = vmatprep.subr.mxu0 0.0
    %642 = vmatpush1.msra.mxu0 0.0
    %643 = vmatprep.subr.mxu0 0.0
    %644 = vmatpush1.msra.mxu0 0.0
    %645 = vmatprep.subr.mxu0 0.0
    %646 = vmatpush1.msra.mxu0 0.0
    %647 = vmatprep.subr.mxu0 0.0
    %648 = vmatpush1.msra.mxu0 0.0
    %649 = vmatprep.subr.mxu0 0.0
    %650 = vmatpush1.msra.mxu0 0.0
    %651 = vmatprep.subr.mxu0 0.0
    %652 = vmatpush1.msra.mxu0 0.0
    %653 = vmatprep.subr.mxu0 0.0
    %654 = vmatpush1.msra.mxu0 %v63
    %655 = vmatprep.subr.mxu0 0.0
    %656 = vmatpush1.msra.mxu0 %v62
    %657 = vmatprep.subr.mxu0 0.0
    %658 = vmatpush1.msra.mxu0 %v61
    %659 = vmatprep.subr.mxu0 0.0
    %660 = vmatpush1.msra.mxu0 %v60
    %661 = vmatprep.subr.mxu0 0.0
    %662 = vmatpush2.msra.mxu0 0.0
    %663 = vmatprep.subr.mxu0 0.0
    %664 = vmatpush2.msra.mxu0 0.0
    %665 = vmatprep.subr.mxu0 0.0
    %666 = vmatpush2.msra.mxu0 0.0
    %667 = vmatprep.subr.mxu0 0.0
    %668 = vmatpush2.msra.mxu0 0.0
    %669 = vmatprep.subr.mxu0 0.0
    %670 = vmatpush2.msra.mxu0 0.0
    %671 = vmatprep.subr.mxu0 0.0
    %672 = vmatpush2.msra.mxu0 0.0
    %673 = vmatprep.subr.mxu0 0.0
    %674 = vmatpush2.msra.mxu0 0.0
    %675 = vmatprep.subr.mxu0 0.0
    %676 = vmatpush2.msra.mxu0 0.0
    %677 = vmatprep.subr.mxu0 0.0
    %678 = vmatpush2.msra.mxu0 0.0
    %679 = vmatprep.subr.mxu0 0.0
    %680 = vmatpush2.msra.mxu0 0.0
    %681 = vmatprep.subr.mxu0 0.0
    %682 = vmatpush2.msra.mxu0 0.0
    %683 = vmatprep.subr.mxu0 0.0
    %684 = vmatpush2.msra.mxu0 0.0
    %685 = vmatprep.subr.mxu0 0.0
    %686 = vmatpush2.msra.mxu0 0.0
    %687 = vmatprep.subr.mxu0 0.0
    %688 = vmatpush2.msra.mxu0 0.0
    %689 = vmatprep.subr.mxu0 0.0
    %690 = vmatpush2.msra.mxu0 0.0
    %691 = vmatprep.subr.mxu0 0.0
    %692 = vmatpush2.msra.mxu0 0.0
    %693 = vmatprep.mubr.f32.mxu0 0.0
    %694 = vmatmul.mubr.f32.gmra.mxu0 %v484
    %v695 = vpop.f32.mrf.mxu0
    %v696 = vadd.f32 %v161, %v695
    %v697 = vpop.f32.mrf.mxu0
    %698 = vdwg.mxu0
    %v699 = vadd.f32 %v626, %v696
    %v700 = vxor.u32 %v699, 2147483648
    %v701 = vmul.f32 %v700, 1.442695
    %v702 = vpow.pop %v701
    %v703 = vadd.f32 %v702, 1.0
    %v704 = vrcp.pop %v703
    %v705 = vmul.f32 1.0, %v704
    %707 = vrot.lane.b32.xlu0 %v696, 64
    %v708 = vpop.permute.xlu0 %707
    %v710 = vmul.f32 %v705, %v708
    %712 = vrot.lane.b32.xlu0 %v710, 64
    %v713 = vpop.permute.xlu0 %712
    %v715 = vadd.f32 %v626, %v713
    %v716 = vtanh.pop %v715
    %v717 = vsub.f32 1.0, %v705
    %719 = vrot.lane.b32.xlu0 %v716, 96
    %v720 = vpop.permute.xlu0 %719
    %v722 = vmul.f32 %v717, %v720
    %v724 = vmul.f32 %v705, %v481
    %v725 = vadd.f32 %v722, %v724
    %v727 = vlaneseq
    %v728 = vshrl.u32 %v727, 7
    %v729 = vsub.s32 0, %v728
    %v730 = vrot.slane %v70, %v729
    %733 = vrot.lane.b32.xlu0 %v725, 96
    %v734 = vpop.permute.xlu0 %733
    %v735 = vsel %vm163, %v734, 0
    %737 = vmatprep.subr.mxu0 0.0
    %738 = vmatpush1.msra.mxu0 0.0
    %739 = vmatprep.subr.mxu0 0.0
    %740 = vmatpush1.msra.mxu0 0.0
    %741 = vmatprep.subr.mxu0 0.0
    %742 = vmatpush1.msra.mxu0 0.0
    %743 = vmatprep.subr.mxu0 0.0
    %744 = vmatpush1.msra.mxu0 0.0
    %745 = vmatprep.subr.mxu0 0.0
    %746 = vmatpush1.msra.mxu0 0.0
    %747 = vmatprep.subr.mxu0 0.0
    %748 = vmatpush1.msra.mxu0 0.0
    %749 = vmatprep.subr.mxu0 0.0
    %750 = vmatpush1.msra.mxu0 0.0
    %751 = vmatprep.subr.mxu0 0.0
    %752 = vmatpush1.msra.mxu0 0.0
    %753 = vmatprep.subr.mxu0 0.0
    %754 = vmatpush1.msra.mxu0 0.0
    %755 = vmatprep.subr.mxu0 0.0
    %756 = vmatpush1.msra.mxu0 0.0
    %757 = vmatprep.subr.mxu0 0.0
    %758 = vmatpush1.msra.mxu0 0.0
    %759 = vmatprep.subr.mxu0 0.0
    %760 = vmatpush1.msra.mxu0 0.0
    %761 = vmatprep.subr.mxu0 0.0
    %762 = vmatpush1.msra.mxu0 %v69
    %763 = vmatprep.subr.mxu0 0.0
    %764 = vmatpush1.msra.mxu0 %v68
    %765 = vmatprep.subr.mxu0 0.0
    %766 = vmatpush1.msra.mxu0 %v67
    %767 = vmatprep.subr.mxu0 0.0
    %768 = vmatpush1.msra.mxu0 %v66
    %769 = vmatprep.subr.mxu0 0.0
    %770 = vmatpush2.msra.mxu0 0.0
    %771 = vmatprep.subr.mxu0 0.0
    %772 = vmatpush2.msra.mxu0 0.0
    %773 = vmatprep.subr.mxu0 0.0
    %774 = vmatpush2.msra.mxu0 0.0
    %775 = vmatprep.subr.mxu0 0.0
    %776 = vmatpush2.msra.mxu0 0.0
    %777 = vmatprep.subr.mxu0 0.0
    %778 = vmatpush2.msra.mxu0 0.0
    %779 = vmatprep.subr.mxu0 0.0
    %780 = vmatpush2.msra.mxu0 0.0
    %781 = vmatprep.subr.mxu0 0.0
    %782 = vmatpush2.msra.mxu0 0.0
    %783 = vmatprep.subr.mxu0 0.0
    %784 = vmatpush2.msra.mxu0 0.0
    %785 = vmatprep.subr.mxu0 0.0
    %786 = vmatpush2.msra.mxu0 0.0
    %787 = vmatprep.subr.mxu0 0.0
    %788 = vmatpush2.msra.mxu0 0.0
    %789 = vmatprep.subr.mxu0 0.0
    %790 = vmatpush2.msra.mxu0 0.0
    %791 = vmatprep.subr.mxu0 0.0
    %792 = vmatpush2.msra.mxu0 0.0
    %793 = vmatprep.subr.mxu0 0.0
    %794 = vmatpush2.msra.mxu0 0.0
    %795 = vmatprep.subr.mxu0 0.0
    %796 = vmatpush2.msra.mxu0 0.0
    %797 = vmatprep.subr.mxu0 0.0
    %798 = vmatpush2.msra.mxu0 0.0
    %799 = vmatprep.subr.mxu0 0.0
    %800 = vmatpush2.msra.mxu0 0.0
    %801 = vmatprep.mubr.f32.mxu0 0.0
    %802 = vmatmul.mubr.f32.gmra.mxu0 %v735
    %v803 = vpop.f32.mrf.mxu0
    %v804 = vadd.f32 %v730, %v803
    %v805 = vpop.f32.mrf.mxu0
    %806 = vdwg.mxu0
    %v809 = vunpack.c.l.s4 1966171168
    %v810 = vunpack.c.0.s8 %v809
    %v811 = vlaneseq
    %v812 = vshrl.u32 %v811, 7
    %v813 = vsub.s32 %v810, %v812
    %v814 = vrot.slane %v804, %v813
    %v815 = vcombine.high %v814, %v814
    %v817 = vunpack.c.l.s4 1966171168
    %v818 = vunpack.c.0.s8 %v817
    %v819 = vlaneseq
    %v820 = vshrl.u32 %v819, 7
    %v821 = vsub.s32 %v818, %v820
    %v822 = vrot.slane %v814, %v821
    %v824 = vunpack.c.l.s4 1966171168
    %v825 = vunpack.c.0.s8 %v824
    %v826 = vlaneseq
    %v827 = vshrl.u32 %v826, 7
    %v828 = vsub.s32 %v825, %v827
    %v829 = vrot.slane %v815, %v828
    %vm832 = vcmask 253952
    %833 = vst.msk [vmem:[%s9 + $0x1] sm:$0x1] %vm832, %v822
    %834 = vst.msk [vmem:[%s9 + $0x5] sm:$0x1] %vm832, %v829
    %835 = vmatprep.subr.mxu0 0.0
    %836 = vmatpush1.msra.mxu0 0.0
    %837 = vmatprep.subr.mxu0 0.0
    %838 = vmatpush1.msra.mxu0 0.0
    %839 = vmatprep.subr.mxu0 0.0
    %840 = vmatpush1.msra.mxu0 0.0
    %841 = vmatprep.subr.mxu0 0.0
    %842 = vmatpush1.msra.mxu0 0.0
    %843 = vmatprep.subr.mxu0 0.0
    %844 = vmatpush1.msra.mxu0 0.0
    %845 = vmatprep.subr.mxu0 0.0
    %846 = vmatpush1.msra.mxu0 0.0
    %847 = vmatprep.subr.mxu0 0.0
    %848 = vmatpush1.msra.mxu0 0.0
    %849 = vmatprep.subr.mxu0 0.0
    %850 = vmatpush1.msra.mxu0 0.0
    %851 = vmatprep.subr.mxu0 0.0
    %852 = vmatpush1.msra.mxu0 0.0
    %853 = vmatprep.subr.mxu0 0.0
    %854 = vmatpush1.msra.mxu0 0.0
    %855 = vmatprep.subr.mxu0 0.0
    %856 = vmatpush1.msra.mxu0 0.0
    %857 = vmatprep.subr.mxu0 0.0
    %858 = vmatpush1.msra.mxu0 0.0
    %859 = vmatprep.subr.mxu0 0.0
    %860 = vmatpush1.msra.mxu0 %v74
    %861 = vmatprep.subr.mxu0 0.0
    %862 = vmatpush1.msra.mxu0 %v73
    %863 = vmatprep.subr.mxu0 0.0
    %864 = vmatpush1.msra.mxu0 %v72
    %865 = vmatprep.subr.mxu0 0.0
    %866 = vmatpush1.msra.mxu0 %v71
    %867 = vmatprep.subr.mxu0 0.0
    %868 = vmatpush2.msra.mxu0 0.0
    %869 = vmatprep.subr.mxu0 0.0
    %870 = vmatpush2.msra.mxu0 0.0
    %871 = vmatprep.subr.mxu0 0.0
    %872 = vmatpush2.msra.mxu0 0.0
    %873 = vmatprep.subr.mxu0 0.0
    %874 = vmatpush2.msra.mxu0 0.0
    %875 = vmatprep.subr.mxu0 0.0
    %876 = vmatpush2.msra.mxu0 0.0
    %877 = vmatprep.subr.mxu0 0.0
    %878 = vmatpush2.msra.mxu0 0.0
    %879 = vmatprep.subr.mxu0 0.0
    %880 = vmatpush2.msra.mxu0 0.0
    %881 = vmatprep.subr.mxu0 0.0
    %882 = vmatpush2.msra.mxu0 0.0
    %883 = vmatprep.subr.mxu0 0.0
    %884 = vmatpush2.msra.mxu0 0.0
    %885 = vmatprep.subr.mxu0 0.0
    %886 = vmatpush2.msra.mxu0 0.0
    %887 = vmatprep.subr.mxu0 0.0
    %888 = vmatpush2.msra.mxu0 0.0
    %889 = vmatprep.subr.mxu0 0.0
    %890 = vmatpush2.msra.mxu0 0.0
    %891 = vmatprep.subr.mxu0 0.0
    %892 = vmatpush2.msra.mxu0 0.0
    %893 = vmatprep.subr.mxu0 0.0
    %894 = vmatpush2.msra.mxu0 0.0
    %895 = vmatprep.subr.mxu0 0.0
    %896 = vmatpush2.msra.mxu0 0.0
    %897 = vmatprep.subr.mxu0 0.0
    %898 = vmatpush2.msra.mxu0 0.0
    %899 = vmatprep.mubr.f32.mxu0 0.0
    %900 = vmatmul.mubr.f32.gmra.mxu0 %v735
    %v901 = vpop.f32.mrf.mxu0
    %v902 = vadd.f32 %v478, %v901
    %v903 = vpop.f32.mrf.mxu0
    %904 = vdwg.mxu0
    %v906 = vsel %vm83, %v902, 0
    %908 = vmatprep.subr.mxu0 0.0
    %909 = vmatpush1.msra.mxu0 0.0
    %910 = vmatprep.subr.mxu0 0.0
    %911 = vmatpush1.msra.mxu0 0.0
    %912 = vmatprep.subr.mxu0 0.0
    %913 = vmatpush1.msra.mxu0 0.0
    %914 = vmatprep.subr.mxu0 0.0
    %915 = vmatpush1.msra.mxu0 0.0
    %916 = vmatprep.subr.mxu0 0.0
    %917 = vmatpush1.msra.mxu0 0.0
    %918 = vmatprep.subr.mxu0 0.0
    %919 = vmatpush1.msra.mxu0 0.0
    %920 = vmatprep.subr.mxu0 0.0
    %921 = vmatpush1.msra.mxu0 0.0
    %922 = vmatprep.subr.mxu0 0.0
    %923 = vmatpush1.msra.mxu0 0.0
    %924 = vmatprep.subr.mxu0 0.0
    %925 = vmatpush1.msra.mxu0 0.0
    %926 = vmatprep.subr.mxu0 0.0
    %927 = vmatpush1.msra.mxu0 0.0
    %928 = vmatprep.subr.mxu0 0.0
    %929 = vmatpush1.msra.mxu0 0.0
    %930 = vmatprep.subr.mxu0 0.0
    %931 = vmatpush1.msra.mxu0 0.0
    %932 = vmatprep.subr.mxu0 0.0
    %933 = vmatpush1.msra.mxu0 0.0
    %934 = vmatprep.subr.mxu0 0.0
    %935 = vmatpush1.msra.mxu0 0.0
    %936 = vmatprep.subr.mxu0 0.0
    %937 = vmatpush1.msra.mxu0 %v59
    %938 = vmatprep.subr.mxu0 0.0
    %939 = vmatpush1.msra.mxu0 %v58
    %940 = vmatprep.subr.mxu0 0.0
    %941 = vmatpush2.msra.mxu0 0.0
    %942 = vmatprep.subr.mxu0 0.0
    %943 = vmatpush2.msra.mxu0 0.0
    %944 = vmatprep.subr.mxu0 0.0
    %945 = vmatpush2.msra.mxu0 0.0
    %946 = vmatprep.subr.mxu0 0.0
    %947 = vmatpush2.msra.mxu0 0.0
    %948 = vmatprep.subr.mxu0 0.0
    %949 = vmatpush2.msra.mxu0 0.0
    %950 = vmatprep.subr.mxu0 0.0
    %951 = vmatpush2.msra.mxu0 0.0
    %952 = vmatprep.subr.mxu0 0.0
    %953 = vmatpush2.msra.mxu0 0.0
    %954 = vmatprep.subr.mxu0 0.0
    %955 = vmatpush2.msra.mxu0 0.0
    %956 = vmatprep.subr.mxu0 0.0
    %957 = vmatpush2.msra.mxu0 0.0
    %958 = vmatprep.subr.mxu0 0.0
    %959 = vmatpush2.msra.mxu0 0.0
    %960 = vmatprep.subr.mxu0 0.0
    %961 = vmatpush2.msra.mxu0 0.0
    %962 = vmatprep.subr.mxu0 0.0
    %963 = vmatpush2.msra.mxu0 0.0
    %964 = vmatprep.subr.mxu0 0.0
    %965 = vmatpush2.msra.mxu0 0.0
    %966 = vmatprep.subr.mxu0 0.0
    %967 = vmatpush2.msra.mxu0 0.0
    %968 = vmatprep.subr.mxu0 0.0
    %969 = vmatpush2.msra.mxu0 0.0
    %970 = vmatprep.subr.mxu0 0.0
    %971 = vmatpush2.msra.mxu0 0.0
    %972 = vmatprep.mubr.f32.mxu0 0.0
    %973 = vmatmul.mubr.f32.gmra.mxu0 %v906
    %v974 = vpop.f32.mrf.mxu0
    %v975 = vadd.f32 %v81, %v974
    %v976 = vpop.f32.mrf.mxu0
    %977 = vdwg.mxu0
    %978 = vmatprep.subr.mxu0 0.0
    %979 = vmatpush1.msra.mxu0 0.0
    %980 = vmatprep.subr.mxu0 0.0
    %981 = vmatpush1.msra.mxu0 0.0
    %982 = vmatprep.subr.mxu0 0.0
    %983 = vmatpush1.msra.mxu0 0.0
    %984 = vmatprep.subr.mxu0 0.0
    %985 = vmatpush1.msra.mxu0 0.0
    %986 = vmatprep.subr.mxu0 0.0
    %987 = vmatpush1.msra.mxu0 0.0
    %988 = vmatprep.subr.mxu0 0.0
    %989 = vmatpush1.msra.mxu0 0.0
    %990 = vmatprep.subr.mxu0 0.0
    %991 = vmatpush1.msra.mxu0 0.0
    %992 = vmatprep.subr.mxu0 0.0
    %993 = vmatpush1.msra.mxu0 0.0
    %994 = vmatprep.subr.mxu0 0.0
    %995 = vmatpush1.msra.mxu0 0.0
    %996 = vmatprep.subr.mxu0 0.0
    %997 = vmatpush1.msra.mxu0 0.0
    %998 = vmatprep.subr.mxu0 0.0
    %999 = vmatpush1.msra.mxu0 0.0
    %1000 = vmatprep.subr.mxu0 0.0
    %1001 = vmatpush1.msra.mxu0 0.0
    %1002 = vmatprep.subr.mxu0 0.0
    %1003 = vmatpush1.msra.mxu0 %v63
    %1004 = vmatprep.subr.mxu0 0.0
    %1005 = vmatpush1.msra.mxu0 %v62
    %1006 = vmatprep.subr.mxu0 0.0
    %1007 = vmatpush1.msra.mxu0 %v61
    %1008 = vmatprep.subr.mxu0 0.0
    %1009 = vmatpush1.msra.mxu0 %v60
    %1010 = vmatprep.subr.mxu0 0.0
    %1011 = vmatpush2.msra.mxu0 0.0
    %1012 = vmatprep.subr.mxu0 0.0
    %1013 = vmatpush2.msra.mxu0 0.0
    %1014 = vmatprep.subr.mxu0 0.0
    %1015 = vmatpush2.msra.mxu0 0.0
    %1016 = vmatprep.subr.mxu0 0.0
    %1017 = vmatpush2.msra.mxu0 0.0
    %1018 = vmatprep.subr.mxu0 0.0
    %1019 = vmatpush2.msra.mxu0 0.0
    %1020 = vmatprep.subr.mxu0 0.0
    %1021 = vmatpush2.msra.mxu0 0.0
    %1022 = vmatprep.subr.mxu0 0.0
    %1023 = vmatpush2.msra.mxu0 0.0
    %1024 = vmatprep.subr.mxu0 0.0
    %1025 = vmatpush2.msra.mxu0 0.0
    %1026 = vmatprep.subr.mxu0 0.0
    %1027 = vmatpush2.msra.mxu0 0.0
    %1028 = vmatprep.subr.mxu0 0.0
    %1029 = vmatpush2.msra.mxu0 0.0
    %1030 = vmatprep.subr.mxu0 0.0
    %1031 = vmatpush2.msra.mxu0 0.0
    %1032 = vmatprep.subr.mxu0 0.0
    %1033 = vmatpush2.msra.mxu0 0.0
    %1034 = vmatprep.subr.mxu0 0.0
    %1035 = vmatpush2.msra.mxu0 0.0
    %1036 = vmatprep.subr.mxu0 0.0
    %1037 = vmatpush2.msra.mxu0 0.0
    %1038 = vmatprep.subr.mxu0 0.0
    %1039 = vmatpush2.msra.mxu0 0.0
    %1040 = vmatprep.subr.mxu0 0.0
    %1041 = vmatpush2.msra.mxu0 0.0
    %1042 = vmatprep.mubr.f32.mxu0 0.0
    %1043 = vmatmul.mubr.f32.gmra.mxu0 %v735
    %v1044 = vpop.f32.mrf.mxu0
    %v1045 = vadd.f32 %v161, %v1044
    %v1046 = vpop.f32.mrf.mxu0
    %1047 = vdwg.mxu0
    %v1048 = vadd.f32 %v975, %v1045
    %v1049 = vxor.u32 %v1048, 2147483648
    %v1050 = vmul.f32 %v1049, 1.442695
    %v1051 = vpow.pop %v1050
    %v1052 = vadd.f32 %v1051, 1.0
    %v1053 = vrcp.pop %v1052
    %v1054 = vmul.f32 1.0, %v1053
    %1056 = vrot.lane.b32.xlu0 %v1045, 64
    %v1057 = vpop.permute.xlu0 %1056
    %v1059 = vmul.f32 %v1054, %v1057
    %1061 = vrot.lane.b32.xlu0 %v1059, 64
    %v1062 = vpop.permute.xlu0 %1061
    %v1064 = vadd.f32 %v975, %v1062
    %v1065 = vtanh.pop %v1064
    %v1066 = vsub.f32 1.0, %v1054
    %1068 = vrot.lane.b32.xlu0 %v1065, 96
    %v1069 = vpop.permute.xlu0 %1068
    %v1071 = vmul.f32 %v1066, %v1069
    %v1072 = vmul.f32 %v1054, %v725
    %v1073 = vadd.f32 %v1071, %v1072
    %1075 = vrot.lane.b32.xlu0 %v1073, 96
    %v1076 = vpop.permute.xlu0 %1075
    %v1077 = vsel %vm163, %v1076, 0
    %1079 = vmatprep.subr.mxu0 0.0
    %1080 = vmatpush1.msra.mxu0 0.0
    %1081 = vmatprep.subr.mxu0 0.0
    %1082 = vmatpush1.msra.mxu0 0.0
    %1083 = vmatprep.subr.mxu0 0.0
    %1084 = vmatpush1.msra.mxu0 0.0
    %1085 = vmatprep.subr.mxu0 0.0
    %1086 = vmatpush1.msra.mxu0 0.0
    %1087 = vmatprep.subr.mxu0 0.0
    %1088 = vmatpush1.msra.mxu0 0.0
    %1089 = vmatprep.subr.mxu0 0.0
    %1090 = vmatpush1.msra.mxu0 0.0
    %1091 = vmatprep.subr.mxu0 0.0
    %1092 = vmatpush1.msra.mxu0 0.0
    %1093 = vmatprep.subr.mxu0 0.0
    %1094 = vmatpush1.msra.mxu0 0.0
    %1095 = vmatprep.subr.mxu0 0.0
    %1096 = vmatpush1.msra.mxu0 0.0
    %1097 = vmatprep.subr.mxu0 0.0
    %1098 = vmatpush1.msra.mxu0 0.0
    %1099 = vmatprep.subr.mxu0 0.0
    %1100 = vmatpush1.msra.mxu0 0.0
    %1101 = vmatprep.subr.mxu0 0.0
    %1102 = vmatpush1.msra.mxu0 0.0
    %1103 = vmatprep.subr.mxu0 0.0
    %1104 = vmatpush1.msra.mxu0 %v69
    %1105 = vmatprep.subr.mxu0 0.0
    %1106 = vmatpush1.msra.mxu0 %v68
    %1107 = vmatprep.subr.mxu0 0.0
    %1108 = vmatpush1.msra.mxu0 %v67
    %1109 = vmatprep.subr.mxu0 0.0
    %1110 = vmatpush1.msra.mxu0 %v66
    %1111 = vmatprep.subr.mxu0 0.0
    %1112 = vmatpush2.msra.mxu0 0.0
    %1113 = vmatprep.subr.mxu0 0.0
    %1114 = vmatpush2.msra.mxu0 0.0
    %1115 = vmatprep.subr.mxu0 0.0
    %1116 = vmatpush2.msra.mxu0 0.0
    %1117 = vmatprep.subr.mxu0 0.0
    %1118 = vmatpush2.msra.mxu0 0.0
    %1119 = vmatprep.subr.mxu0 0.0
    %1120 = vmatpush2.msra.mxu0 0.0
    %1121 = vmatprep.subr.mxu0 0.0
    %1122 = vmatpush2.msra.mxu0 0.0
    %1123 = vmatprep.subr.mxu0 0.0
    %1124 = vmatpush2.msra.mxu0 0.0
    %1125 = vmatprep.subr.mxu0 0.0
    %1126 = vmatpush2.msra.mxu0 0.0
    %1127 = vmatprep.subr.mxu0 0.0
    %1128 = vmatpush2.msra.mxu0 0.0
    %1129 = vmatprep.subr.mxu0 0.0
    %1130 = vmatpush2.msra.mxu0 0.0
    %1131 = vmatprep.subr.mxu0 0.0
    %1132 = vmatpush2.msra.mxu0 0.0
    %1133 = vmatprep.subr.mxu0 0.0
    %1134 = vmatpush2.msra.mxu0 0.0
    %1135 = vmatprep.subr.mxu0 0.0
    %1136 = vmatpush2.msra.mxu0 0.0
    %1137 = vmatprep.subr.mxu0 0.0
    %1138 = vmatpush2.msra.mxu0 0.0
    %1139 = vmatprep.subr.mxu0 0.0
    %1140 = vmatpush2.msra.mxu0 0.0
    %1141 = vmatprep.subr.mxu0 0.0
    %1142 = vmatpush2.msra.mxu0 0.0
    %1143 = vmatprep.mubr.f32.mxu0 0.0
    %1144 = vmatmul.mubr.f32.gmra.mxu0 %v1077
    %v1145 = vpop.f32.mrf.mxu0
    %v1146 = vadd.f32 %v730, %v1145
    %v1147 = vpop.f32.mrf.mxu0
    %1148 = vdwg.mxu0
    %v1151 = vunpack.c.l.s4 1966171168
    %v1152 = vunpack.c.0.s8 %v1151
    %v1153 = vlaneseq
    %v1154 = vshrl.u32 %v1153, 7
    %v1155 = vsub.s32 %v1152, %v1154
    %v1156 = vrot.slane %v1146, %v1155
    %v1157 = vcombine.high %v1156, %v1156
    %v1159 = vunpack.c.l.s4 1966171168
    %v1160 = vunpack.c.0.s8 %v1159
    %v1161 = vlaneseq
    %v1162 = vshrl.u32 %v1161, 7
    %v1163 = vsub.s32 %v1160, %v1162
    %v1164 = vrot.slane %v1156, %v1163
    %v1166 = vunpack.c.l.s4 1966171168
    %v1167 = vunpack.c.0.s8 %v1166
    %v1168 = vlaneseq
    %v1169 = vshrl.u32 %v1168, 7
    %v1170 = vsub.s32 %v1167, %v1169
    %v1171 = vrot.slane %v1157, %v1170
    %1174 = vst.msk [vmem:[%s9 + $0x2] sm:$0x1] %vm832, %v1164
    %1175 = vst.msk [vmem:[%s9 + $0x6] sm:$0x1] %vm832, %v1171
    %v1177 = vunpack.c.l.s4 1966171168
    %v1178 = vunpack.c.0.s8 %v1177
    %v1179 = vlaneseq
    %v1180 = vshrl.u32 %v1179, 7
    %v1181 = vsub.s32 %v1178, %v1180
    %v1182 = vrot.slane %v1073, %v1181
    %v1183 = vcombine.high %v1182, %v1182
    %v1185 = vunpack.c.l.s4 1966171168
    %v1186 = vunpack.c.0.s8 %v1185
    %v1187 = vlaneseq
    %v1188 = vshrl.u32 %v1187, 7
    %v1189 = vsub.s32 %v1186, %v1188
    %v1190 = vrot.slane %v1182, %v1189
    %v1192 = vunpack.c.l.s4 1966171168
    %v1193 = vunpack.c.0.s8 %v1192
    %v1194 = vlaneseq
    %v1195 = vshrl.u32 %v1194, 7
    %v1196 = vsub.s32 %v1193, %v1195
    %v1197 = vrot.slane %v1183, %v1196
    %v1198 = vlaneseq
    %v1199 = vshrl.u32 %v1198, 7
    %v1200 = vsub.s32 0, %v1199
    %v1201 = vrot.slane %v1190, %v1200
    %v1202 = vlaneseq
    %v1203 = vshrl.u32 %v1202, 7
    %v1204 = vsub.s32 0, %v1203
    %v1205 = vrot.slane %v1197, %v1204
    %1206 = vrot.lane.b32.xlu0 %v1201, 96
    %v1207 = vpop.permute.xlu0 %1206
    %1208 = vrot.lane.b32.xlu0 %v1205, 96
    %v1209 = vpop.permute.xlu0 %1208
    %1212 = vst.msk [vmem:[%s9] sm:$0x1] %vm832, %v1207
    %1213 = vst.msk [vmem:[%s9 + $0x4] sm:$0x1] %vm832, %v1209
    // Predicated region
    $region46: #{tpu_custom_call.1} parent=1 // pred_check
      _
    $region47: #{tpu_custom_call.1} parent=1 // pred_check_branch
      %1215 = sbr.rel (0) target = $region49
    $region48: #{tpu_custom_call.1} parent=1 // pred_region
      _
    $region49: #{tpu_custom_call.1} parent=1 // pred_fallthru
      _
    // Predicated region
    $region50: #{tpu_custom_call.1} parent=1 // pred_check
      _
    $region51: #{tpu_custom_call.1} parent=1 // pred_check_branch
      %1217 = sbr.rel (0) target = $region53
    $region52: #{tpu_custom_call.1} parent=1 // pred_region
      _
    $region53: #{tpu_custom_call.1} parent=1 // pred_fallthru
      _
    %1218 = vsyncpa [#allocation3], 1
    %1219 = vsyncpa [#allocation5], 1

</llo_original>
